<compile_context>
chip_gen: v6e
topology: v6e:2x2x1
jax: 0.10.0
libtpu: 0.0.40
codegen_flags: <defaults>
</compile_context>

<pallas_src>
import math
import functools

import jax
import jax.numpy as jnp
from jax.experimental import pallas as pl
from jax.experimental.pallas import tpu as pltpu


# ----------------------------- kernel ---------------------------------------

def pitch_predictor_kernel(alpha_ref, xs_ref, pos_ref,
                           w_ref, b_ref, g_ref, be_ref,
                           wl_ref, bl_ref,
                           out_ref,
                           xp_ref,
                           *, kernel_size):
    """Whole PitchPredictor forward in one grid step.

    alpha_ref      : [1, 1]       f32   SMEM (pos_embed_alpha)
    xs_ref/pos_ref : [B, T, C]    f32   (input channels zero-padded to C)
    w_ref          : [L, K*C, C]  bf16  (im2col-flattened conv weights)
    b/g/be_ref     : [L, C]       f32   (conv bias, LN gamma, LN beta)
    wl_ref         : [odim, C]    bf16  (final Linear weight, pre-transposed)
    bl_ref         : [odim, 1]    f32
    out_ref        : [odim, B*T]  f32   (lane-dense: time on the lane axis)
    xp_ref         : [B, left+T+pad, C] f32 VMEM scratch with persistent 0 halo
    """
    B, T, C = xs_ref.shape
    n_layers = w_ref.shape[0]
    K = kernel_size
    pad = (K - 1) // 2
    left = xp_ref.shape[1] - T - pad       # 8-aligned start of the centre rows
    BT = B * T
    eps = 1e-12                            # LayerNorm(nout, eps=1e-12)

    # xs + pos_embed_alpha * positions
    alpha = alpha_ref[0, 0]
    x0 = xs_ref[...] + alpha * pos_ref[...]                      # [B, T, C] f32

    # Zero only the halo strips (once).  Every layer rewrites only the centre
    # rows, so the halo stays zero and no per-layer pad/concatenate is needed.
    xp_ref[:, pl.ds(0, left), :] = jnp.zeros((B, left, C), jnp.float32)
    if pad > 0:
        xp_ref[:, pl.ds(left + T, pad), :] = jnp.zeros((B, pad, C), jnp.float32)
    xp_ref[:, pl.ds(left, T), :] = x0                            # aligned store

    act = None
    for l in range(n_layers):                                    # static unroll
        # -- im2col: K shifted [B*T, C] windows -> one [B*T, K*C] slab --------
        slabs = [
            xp_ref[:, pl.ds(left - pad + k, T), :].reshape(BT, C)
            for k in range(K)
        ]
        xcol = jnp.concatenate(slabs, axis=-1).astype(jnp.bfloat16)  # [BT, K*C]
        # -- one bf16 MXU matmul per layer, f32 accumulation -------------------
        y = jnp.dot(xcol, w_ref[l], preferred_element_type=jnp.float32)
        # -- bias + ReLU + LayerNorm(channels) in f32 --------------------------
        y = jnp.maximum(y + b_ref[l][None, :], 0.0)
        mu = jnp.mean(y, axis=-1, keepdims=True)
        var = jnp.mean(jnp.square(y - mu), axis=-1, keepdims=True)
        y = (y - mu) * jax.lax.rsqrt(var + eps)
        y = y * g_ref[l][None, :] + be_ref[l][None, :]
        if l + 1 < n_layers:
            xp_ref[:, pl.ds(left, T), :] = y.reshape(B, T, C)    # feed next conv
        else:
            act = y                                              # [BT, C] f32
    # (Dropout is identity at inference.)

    # -- final Linear, emitted lane-dense as [odim, B*T] (time last) ----------
    out = jax.lax.dot_general(
        wl_ref[...], act.astype(jnp.bfloat16),
        dimension_numbers=(((1,), (1,)), ((), ())),
        preferred_element_type=jnp.float32)                      # [odim, BT]
    out_ref[...] = (out + bl_ref[...]).astype(out_ref.dtype)


# ------------------------------ wrapper --------------------------------------

def pitch_predictor_pallas(alpha, xs, pos_emb, params, *,
                           kernel_size, n_layers, padding="SAME"):
    B, T, idim = xs.shape
    C = params["w0"].shape[-1]          # n_chans
    odim = params["wl"].shape[-1]
    K = kernel_size
    assert K % 2 == 1, "SAME padding path assumes an odd kernel size"
    assert padding == "SAME"            # TODO(synk): causal ('LEFT') padding path
    assert idim <= C                    # TODO(synk): idim > n_chans needs a wider scratch
    pad = (K - 1) // 2
    left = max(8, ((pad + 7) // 8) * 8)  # 8-aligned left halo (>= pad)

    f32, bf16 = jnp.float32, jnp.bfloat16

    # ---- parameter / input preprocessing (plain XLA, outside the kernel) ----
    # Zero-pad the layer-0 input channels to C so every layer is a uniform
    # [B*T, K*C] x [K*C, C] matmul; flatten conv weights for im2col.
    w0 = jnp.pad(params["w0"], ((0, 0), (0, C - idim), (0, 0)))      # [K, C, C]
    w_all = jnp.concatenate([w0[None], params["wr"]], axis=0)        # [L, K, C, C]
    w_all = w_all.reshape(n_layers, K * C, C).astype(bf16)
    b_all = jnp.concatenate([params["b0"], params["br"]], axis=0).astype(f32)
    g_all = jnp.concatenate([params["g0"], params["gr"]], axis=0).astype(f32)
    be_all = jnp.concatenate([params["be0"], params["ber"]], axis=0).astype(f32)
    wl_t = params["wl"].T.astype(bf16)                               # [odim, C]
    bl = params["bl"].reshape(odim, 1).astype(f32)                   # [odim, 1]

    xs_p = jnp.pad(xs, ((0, 0), (0, 0), (0, C - idim))).astype(f32)
    pos_p = jnp.pad(pos_emb, ((0, 0), (0, 0), (0, C - idim))).astype(f32)

    kernel = functools.partial(pitch_predictor_kernel, kernel_size=K)
    vmem = pl.BlockSpec(memory_space=pltpu.MemorySpace.VMEM)

    # Single grid step: at these sizes the whole problem (inputs + weights +
    # scratch) lives comfortably in VMEM, so grid iteration would only add
    # per-step overhead and re-DMA the weights.
    out_lane_dense = pl.pallas_call(
        kernel,
        out_shape=jax.ShapeDtypeStruct((odim, B * T), f32),
        in_specs=[
            pl.BlockSpec(memory_space=pltpu.MemorySpace.SMEM),   # alpha (1,1)
            vmem,   # xs (channel-padded)
            vmem,   # positional embedding (channel-padded)
            vmem,   # conv weights [L, K*C, C] bf16
            vmem,   # conv biases  [L, C]
            vmem,   # LN gammas    [L, C]
            vmem,   # LN betas     [L, C]
            vmem,   # linear W^T   [odim, C] bf16
            vmem,   # linear bias  [odim, 1]
        ],
        out_specs=vmem,
        scratch_shapes=[pltpu.VMEM((B, left + T + pad, C), f32)],
        compiler_params=pltpu.CompilerParams(
            vmem_limit_bytes=32 * 1024 * 1024),
    )(alpha, xs_p, pos_p, w_all, b_all, g_all, be_all, wl_t, bl)

    # back to the module's [B, T, odim] layout (cheap XLA transpose outside)
    return out_lane_dense.T.reshape(B, T, odim)


# ----------------------- glue: sinusoidal positions --------------------------

def sinusoidal_embedding_table(num_embeddings, embedding_dim, padding_idx=0):
    """fairseq-style sinusoidal embedding table (row padding_idx zeroed)."""
    half_dim = embedding_dim // 2
    scale = math.log(10000.0) / (half_dim - 1)
    freqs = jnp.exp(jnp.arange(half_dim, dtype=jnp.float32) * -scale)
    ang = jnp.arange(num_embeddings, dtype=jnp.float32)[:, None] * freqs[None, :]
    emb = jnp.concatenate([jnp.sin(ang), jnp.cos(ang)], axis=1)
    if embedding_dim % 2 == 1:
        emb = jnp.concatenate(
            [emb, jnp.zeros((num_embeddings, 1), jnp.float32)], axis=1)
    emb = emb.at[padding_idx].set(0.0)
    return emb


def make_positions(x0, padding_idx=0):
    mask = (x0 != padding_idx)
    return jnp.cumsum(mask.astype(jnp.int32), axis=1) * mask + padding_idx


# ----------------------- pure-JAX reference (for checking) -------------------

def reference_forward(alpha, xs, pos_emb, params, *, kernel_size, n_layers):
    x = xs + alpha[0, 0] * pos_emb
    pad = (kernel_size - 1) // 2

    def layer(x, w, b, g, be):
        xp = jnp.pad(x, ((0, 0), (pad, pad), (0, 0)))
        T = x.shape[1]
        y = sum(jnp.einsum("btc,cd->btd", xp[:, k:k + T, :], w[k])
                for k in range(kernel_size)) + b
        y = jnp.maximum(y, 0.0)
        mu = jnp.mean(y, axis=-1, keepdims=True)
        var = jnp.mean((y - mu) ** 2, axis=-1, keepdims=True)
        return (y - mu) / jnp.sqrt(var + 1e-12) * g + be

    x = layer(x, params["w0"], params["b0"][0], params["g0"][0], params["be0"][0])
    for l in range(n_layers - 1):
        x = layer(x, params["wr"][l], params["br"][l], params["gr"][l],
                  params["ber"][l])
    return jnp.einsum("btc,cd->btd", x, params["wl"]) + params["bl"][0]


# --------------------------------- main --------------------------------------

if __name__ == "__main__":
    B, T = 2, 16
    idim, n_chans, odim = 8, 32, 2
    n_layers, kernel_size = 5, 5

    key = jax.random.PRNGKey(0)
    ks = jax.random.split(key, 16)

    xs = jax.random.normal(ks[0], (B, T, idim), jnp.float32)

    # deterministic synthetic parameters (shapes from module __init__)
    params = {
        "w0": 0.1 * jax.random.normal(ks[1], (kernel_size, idim, n_chans), jnp.float32),
        "b0": 0.1 * jax.random.normal(ks[2], (1, n_chans), jnp.float32),
        "g0": 1.0 + 0.1 * jax.random.normal(ks[3], (1, n_chans), jnp.float32),
        "be0": 0.1 * jax.random.normal(ks[4], (1, n_chans), jnp.float32),
        "wr": 0.1 * jax.random.normal(ks[5], (n_layers - 1, kernel_size, n_chans, n_chans), jnp.float32),
        "br": 0.1 * jax.random.normal(ks[6], (n_layers - 1, n_chans), jnp.float32),
        "gr": 1.0 + 0.1 * jax.random.normal(ks[7], (n_layers - 1, n_chans), jnp.float32),
        "ber": 0.1 * jax.random.normal(ks[8], (n_layers - 1, n_chans), jnp.float32),
        "wl": 0.1 * jax.random.normal(ks[9], (n_chans, odim), jnp.float32),
        "bl": 0.1 * jax.random.normal(ks[10], (1, odim), jnp.float32),
    }
    alpha = jnp.ones((1, 1), jnp.float32)  # pos_embed_alpha (init = 1)

    # SinusoidalPositionalEmbedding(idim, padding_idx=0) applied to xs[..., 0]
    table = sinusoidal_embedding_table(T + 2, idim, padding_idx=0)
    positions = make_positions(xs[..., 0], padding_idx=0)      # [B, T] int
    pos_emb = table[positions]                                  # [B, T, idim]

    out = pitch_predictor_pallas(alpha, xs, pos_emb, params,
                                 kernel_size=kernel_size, n_layers=n_layers)
    out = jax.block_until_ready(out)

    ref = reference_forward(alpha, xs, pos_emb, params,
                            kernel_size=kernel_size, n_layers=n_layers)
    assert out.shape == (B, T, odim)
    # Kernel matmuls use bf16 operands (f32 accumulation); compare against a
    # pure-f32 reference with a correspondingly relaxed tolerance.
    assert jnp.allclose(out, ref, atol=3e-2, rtol=3e-2), "mismatch vs reference"

    print("KERNEL_OK")
</pallas_src>

<mosaic_0001>
module attributes {stable_mosaic.version = 11 : i64} {
  func.func @pitch_predictor_kernel(%arg0: memref<1x1xf32, #tpu.memory_space<smem>>, %arg1: memref<2x16x32xf32, #tpu.memory_space<vmem>>, %arg2: memref<2x16x32xf32, #tpu.memory_space<vmem>>, %arg3: memref<5x160x32xbf16, #tpu.memory_space<vmem>>, %arg4: memref<5x32xf32, #tpu.memory_space<vmem>>, %arg5: memref<5x32xf32, #tpu.memory_space<vmem>>, %arg6: memref<5x32xf32, #tpu.memory_space<vmem>>, %arg7: memref<2x32xbf16, #tpu.memory_space<vmem>>, %arg8: memref<2x1xf32, #tpu.memory_space<vmem>>, %arg9: memref<2x32xf32, #tpu.memory_space<vmem>>, %arg10: memref<2x26x32xf32, #tpu.memory_space<vmem>>) attributes {dimension_semantics = [], scalar_prefetch = 0 : i64, scratch_operands = 1 : i64, tpu.core_type = #tpu.core_type<tc>} {
    %c0 = arith.constant 0 : index
    %c0_0 = arith.constant 0 : index
    %0 = memref.load %arg0[%c0, %c0_0] : memref<1x1xf32, #tpu.memory_space<smem>>
    %c0_1 = arith.constant 0 : index
    %c0_2 = arith.constant 0 : index
    %c0_3 = arith.constant 0 : index
    %1 = vector.load %arg1[%c0_1, %c0_2, %c0_3] : memref<2x16x32xf32, #tpu.memory_space<vmem>>, vector<2x16x32xf32>
    %c0_4 = arith.constant 0 : index
    %c0_5 = arith.constant 0 : index
    %c0_6 = arith.constant 0 : index
    %2 = vector.load %arg2[%c0_4, %c0_5, %c0_6] : memref<2x16x32xf32, #tpu.memory_space<vmem>>, vector<2x16x32xf32>
    %3 = vector.broadcast %0 : f32 to vector<2x16x32xf32>
    %4 = arith.mulf %3, %2 : vector<2x16x32xf32>
    %5 = arith.addf %1, %4 : vector<2x16x32xf32>
    %cst = arith.constant 0.000000e+00 : f32
    %6 = vector.broadcast %cst : f32 to vector<2x8x32xf32>
    %c0_7 = arith.constant 0 : index
    %c0_8 = arith.constant 0 : index
    %c0_9 = arith.constant 0 : index
    %7 = vector.load %arg10[%c0_7, %c0_8, %c0_9] : memref<2x26x32xf32, #tpu.memory_space<vmem>>, vector<2x8x32xf32>
    tpu.vector_store %arg10[%c0_7, %c0_8, %c0_9], %6 {strides = array<i32>} : memref<2x26x32xf32, #tpu.memory_space<vmem>>, vector<2x8x32xf32>,
    %cst_10 = arith.constant 0.000000e+00 : f32
    %8 = vector.broadcast %cst_10 : f32 to vector<2x2x32xf32>
    %c0_11 = arith.constant 0 : index
    %c24 = arith.constant 24 : index
    %c0_12 = arith.constant 0 : index
    %9 = vector.load %arg10[%c0_11, %c24, %c0_12] : memref<2x26x32xf32, #tpu.memory_space<vmem>>, vector<2x2x32xf32>
    tpu.vector_store %arg10[%c0_11, %c24, %c0_12], %8 {strides = array<i32>} : memref<2x26x32xf32, #tpu.memory_space<vmem>>, vector<2x2x32xf32>,
    %c0_13 = arith.constant 0 : index
    %c8 = arith.constant 8 : index
    %c0_14 = arith.constant 0 : index
    %10 = vector.load %arg10[%c0_13, %c8, %c0_14] : memref<2x26x32xf32, #tpu.memory_space<vmem>>, vector<2x16x32xf32>
    tpu.vector_store %arg10[%c0_13, %c8, %c0_14], %5 {strides = array<i32>} : memref<2x26x32xf32, #tpu.memory_space<vmem>>, vector<2x16x32xf32>,
    %c0_15 = arith.constant 0 : index
    %c6 = arith.constant 6 : index
    %c0_16 = arith.constant 0 : index
    %11 = vector.load %arg10[%c0_15, %c6, %c0_16] : memref<2x26x32xf32, #tpu.memory_space<vmem>>, vector<2x16x32xf32>
    %12 = vector.shape_cast %11 : vector<2x16x32xf32> to vector<32x32xf32>
    %c0_17 = arith.constant 0 : index
    %c7 = arith.constant 7 : index
    %c0_18 = arith.constant 0 : index
    %13 = vector.load %arg10[%c0_17, %c7, %c0_18] : memref<2x26x32xf32, #tpu.memory_space<vmem>>, vector<2x16x32xf32>
    %14 = vector.shape_cast %13 : vector<2x16x32xf32> to vector<32x32xf32>
    %c0_19 = arith.constant 0 : index
    %c8_20 = arith.constant 8 : index
    %c0_21 = arith.constant 0 : index
    %15 = vector.load %arg10[%c0_19, %c8_20, %c0_21] : memref<2x26x32xf32, #tpu.memory_space<vmem>>, vector<2x16x32xf32>
    %16 = vector.shape_cast %15 : vector<2x16x32xf32> to vector<32x32xf32>
    %c0_22 = arith.constant 0 : index
    %c9 = arith.constant 9 : index
    %c0_23 = arith.constant 0 : index
    %17 = vector.load %arg10[%c0_22, %c9, %c0_23] : memref<2x26x32xf32, #tpu.memory_space<vmem>>, vector<2x16x32xf32>
    %18 = vector.shape_cast %17 : vector<2x16x32xf32> to vector<32x32xf32>
    %c0_24 = arith.constant 0 : index
    %c10 = arith.constant 10 : index
    %c0_25 = arith.constant 0 : index
    %19 = vector.load %arg10[%c0_24, %c10, %c0_25] : memref<2x26x32xf32, #tpu.memory_space<vmem>>, vector<2x16x32xf32>
    %20 = vector.shape_cast %19 : vector<2x16x32xf32> to vector<32x32xf32>
    %21 = tpu.concatenate %12, %14, %16, %18, %20 in 1 : vector<32x32xf32>, vector<32x32xf32>, vector<32x32xf32>, vector<32x32xf32>, vector<32x32xf32> -> vector<32x160xf32>
    %22 = arith.truncf %21 : vector<32x160xf32> to vector<32x160xbf16>
    %c0_26 = arith.constant 0 : index
    %c0_27 = arith.constant 0 : index
    %c0_28 = arith.constant 0 : index
    %23 = vector.load %arg3[%c0_26, %c0_27, %c0_28] : memref<5x160x32xbf16, #tpu.memory_space<vmem>>, vector<1x160x32xbf16>
    %24 = vector.shape_cast %23 : vector<1x160x32xbf16> to vector<160x32xbf16>
    %cst_29 = arith.constant dense<0.000000e+00> : vector<32x32xf32>
    %25 = tpu.matmul %22, %24, %cst_29 {dimension_numbers = #tpu.dot_dimension_numbers<[1], [0], [0], [1], [0, 0, 1, 1], [], []>} : vector<32x160xbf16>, vector<160x32xbf16>, vector<32x32xf32> -> vector<32x32xf32>
    %c0_30 = arith.constant 0 : index
    %c0_31 = arith.constant 0 : index
    %26 = vector.load %arg4[%c0_30, %c0_31] : memref<5x32xf32, #tpu.memory_space<vmem>>, vector<1x32xf32>
    %27 = vector.shape_cast %26 : vector<1x32xf32> to vector<32xf32>
    %28 = vector.shape_cast %27 : vector<32xf32> to vector<1x32xf32>
    %29 = vector.broadcast %28 : vector<1x32xf32> to vector<32x32xf32>
    %30 = arith.addf %25, %29 : vector<32x32xf32>
    %cst_32 = arith.constant 0.000000e+00 : f32
    %31 = vector.broadcast %cst_32 : f32 to vector<32x32xf32>
    %32 = arith.maximumf %30, %31 : vector<32x32xf32>
    %cst_33 = arith.constant dense<0.000000e+00> : vector<32xf32>
    %33 = vector.multi_reduction <add>, %32, %cst_33 [1] : vector<32x32xf32> to vector<32xf32>
    %34 = vector.shape_cast %33 : vector<32xf32> to vector<32x1xf32>
    %cst_34 = arith.constant 3.200000e+01 : f32
    %35 = vector.broadcast %cst_34 : f32 to vector<32x1xf32>
    %36 = arith.divf %34, %35 : vector<32x1xf32>
    %37 = vector.broadcast %36 : vector<32x1xf32> to vector<32x32xf32>
    %38 = arith.subf %32, %37 : vector<32x32xf32>
    %39 = arith.mulf %38, %38 : vector<32x32xf32>
    %cst_35 = arith.constant dense<0.000000e+00> : vector<32xf32>
    %40 = vector.multi_reduction <add>, %39, %cst_35 [1] : vector<32x32xf32> to vector<32xf32>
    %41 = vector.shape_cast %40 : vector<32xf32> to vector<32x1xf32>
    %cst_36 = arith.constant 3.200000e+01 : f32
    %42 = vector.broadcast %cst_36 : f32 to vector<32x1xf32>
    %43 = arith.divf %41, %42 : vector<32x1xf32>
    %44 = vector.broadcast %36 : vector<32x1xf32> to vector<32x32xf32>
    %45 = arith.subf %32, %44 : vector<32x32xf32>
    %cst_37 = arith.constant 9.99999996E-13 : f32
    %46 = vector.broadcast %cst_37 : f32 to vector<32x1xf32>
    %47 = arith.addf %43, %46 : vector<32x1xf32>
    %48 = math.rsqrt %47 : vector<32x1xf32>
    %49 = vector.broadcast %48 : vector<32x1xf32> to vector<32x32xf32>
    %50 = arith.mulf %45, %49 : vector<32x32xf32>
    %c0_38 = arith.constant 0 : index
    %c0_39 = arith.constant 0 : index
    %51 = vector.load %arg5[%c0_38, %c0_39] : memref<5x32xf32, #tpu.memory_space<vmem>>, vector<1x32xf32>
    %52 = vector.shape_cast %51 : vector<1x32xf32> to vector<32xf32>
    %53 = vector.shape_cast %52 : vector<32xf32> to vector<1x32xf32>
    %54 = vector.broadcast %53 : vector<1x32xf32> to vector<32x32xf32>
    %55 = arith.mulf %50, %54 : vector<32x32xf32>
    %c0_40 = arith.constant 0 : index
    %c0_41 = arith.constant 0 : index
    %56 = vector.load %arg6[%c0_40, %c0_41] : memref<5x32xf32, #tpu.memory_space<vmem>>, vector<1x32xf32>
    %57 = vector.shape_cast %56 : vector<1x32xf32> to vector<32xf32>
    %58 = vector.shape_cast %57 : vector<32xf32> to vector<1x32xf32>
    %59 = vector.broadcast %58 : vector<1x32xf32> to vector<32x32xf32>
    %60 = arith.addf %55, %59 : vector<32x32xf32>
    %61 = vector.shape_cast %60 : vector<32x32xf32> to vector<2x16x32xf32>
    %c0_42 = arith.constant 0 : index
    %c8_43 = arith.constant 8 : index
    %c0_44 = arith.constant 0 : index
    %62 = vector.load %arg10[%c0_42, %c8_43, %c0_44] : memref<2x26x32xf32, #tpu.memory_space<vmem>>, vector<2x16x32xf32>
    tpu.vector_store %arg10[%c0_42, %c8_43, %c0_44], %61 {strides = array<i32>} : memref<2x26x32xf32, #tpu.memory_space<vmem>>, vector<2x16x32xf32>,
    %c0_45 = arith.constant 0 : index
    %c6_46 = arith.constant 6 : index
    %c0_47 = arith.constant 0 : index
    %63 = vector.load %arg10[%c0_45, %c6_46, %c0_47] : memref<2x26x32xf32, #tpu.memory_space<vmem>>, vector<2x16x32xf32>
    %64 = vector.shape_cast %63 : vector<2x16x32xf32> to vector<32x32xf32>
    %c0_48 = arith.constant 0 : index
    %c7_49 = arith.constant 7 : index
    %c0_50 = arith.constant 0 : index
    %65 = vector.load %arg10[%c0_48, %c7_49, %c0_50] : memref<2x26x32xf32, #tpu.memory_space<vmem>>, vector<2x16x32xf32>
    %66 = vector.shape_cast %65 : vector<2x16x32xf32> to vector<32x32xf32>
    %c0_51 = arith.constant 0 : index
    %c8_52 = arith.constant 8 : index
    %c0_53 = arith.constant 0 : index
    %67 = vector.load %arg10[%c0_51, %c8_52, %c0_53] : memref<2x26x32xf32, #tpu.memory_space<vmem>>, vector<2x16x32xf32>
    %68 = vector.shape_cast %67 : vector<2x16x32xf32> to vector<32x32xf32>
    %c0_54 = arith.constant 0 : index
    %c9_55 = arith.constant 9 : index
    %c0_56 = arith.constant 0 : index
    %69 = vector.load %arg10[%c0_54, %c9_55, %c0_56] : memref<2x26x32xf32, #tpu.memory_space<vmem>>, vector<2x16x32xf32>
    %70 = vector.shape_cast %69 : vector<2x16x32xf32> to vector<32x32xf32>
    %c0_57 = arith.constant 0 : index
    %c10_58 = arith.constant 10 : index
    %c0_59 = arith.constant 0 : index
    %71 = vector.load %arg10[%c0_57, %c10_58, %c0_59] : memref<2x26x32xf32, #tpu.memory_space<vmem>>, vector<2x16x32xf32>
    %72 = vector.shape_cast %71 : vector<2x16x32xf32> to vector<32x32xf32>
    %73 = tpu.concatenate %64, %66, %68, %70, %72 in 1 : vector<32x32xf32>, vector<32x32xf32>, vector<32x32xf32>, vector<32x32xf32>, vector<32x32xf32> -> vector<32x160xf32>
    %74 = arith.truncf %73 : vector<32x160xf32> to vector<32x160xbf16>
    %c1 = arith.constant 1 : index
    %c0_60 = arith.constant 0 : index
    %c0_61 = arith.constant 0 : index
    %75 = vector.load %arg3[%c1, %c0_60, %c0_61] : memref<5x160x32xbf16, #tpu.memory_space<vmem>>, vector<1x160x32xbf16>
    %76 = vector.shape_cast %75 : vector<1x160x32xbf16> to vector<160x32xbf16>
    %cst_62 = arith.constant dense<0.000000e+00> : vector<32x32xf32>
    %77 = tpu.matmul %74, %76, %cst_62 {dimension_numbers = #tpu.dot_dimension_numbers<[1], [0], [0], [1], [0, 0, 1, 1], [], []>} : vector<32x160xbf16>, vector<160x32xbf16>, vector<32x32xf32> -> vector<32x32xf32>
    %c1_63 = arith.constant 1 : index
    %c0_64 = arith.constant 0 : index
    %78 = vector.load %arg4[%c1_63, %c0_64] : memref<5x32xf32, #tpu.memory_space<vmem>>, vector<1x32xf32>
    %79 = vector.shape_cast %78 : vector<1x32xf32> to vector<32xf32>
    %80 = vector.shape_cast %79 : vector<32xf32> to vector<1x32xf32>
    %81 = vector.broadcast %80 : vector<1x32xf32> to vector<32x32xf32>
    %82 = arith.addf %77, %81 : vector<32x32xf32>
    %cst_65 = arith.constant 0.000000e+00 : f32
    %83 = vector.broadcast %cst_65 : f32 to vector<32x32xf32>
    %84 = arith.maximumf %82, %83 : vector<32x32xf32>
    %cst_66 = arith.constant dense<0.000000e+00> : vector<32xf32>
    %85 = vector.multi_reduction <add>, %84, %cst_66 [1] : vector<32x32xf32> to vector<32xf32>
    %86 = vector.shape_cast %85 : vector<32xf32> to vector<32x1xf32>
    %cst_67 = arith.constant 3.200000e+01 : f32
    %87 = vector.broadcast %cst_67 : f32 to vector<32x1xf32>
    %88 = arith.divf %86, %87 : vector<32x1xf32>
    %89 = vector.broadcast %88 : vector<32x1xf32> to vector<32x32xf32>
    %90 = arith.subf %84, %89 : vector<32x32xf32>
    %91 = arith.mulf %90, %90 : vector<32x32xf32>
    %cst_68 = arith.constant dense<0.000000e+00> : vector<32xf32>
    %92 = vector.multi_reduction <add>, %91, %cst_68 [1] : vector<32x32xf32> to vector<32xf32>
    %93 = vector.shape_cast %92 : vector<32xf32> to vector<32x1xf32>
    %cst_69 = arith.constant 3.200000e+01 : f32
    %94 = vector.broadcast %cst_69 : f32 to vector<32x1xf32>
    %95 = arith.divf %93, %94 : vector<32x1xf32>
    %96 = vector.broadcast %88 : vector<32x1xf32> to vector<32x32xf32>
    %97 = arith.subf %84, %96 : vector<32x32xf32>
    %cst_70 = arith.constant 9.99999996E-13 : f32
    %98 = vector.broadcast %cst_70 : f32 to vector<32x1xf32>
    %99 = arith.addf %95, %98 : vector<32x1xf32>
    %100 = math.rsqrt %99 : vector<32x1xf32>
    %101 = vector.broadcast %100 : vector<32x1xf32> to vector<32x32xf32>
    %102 = arith.mulf %97, %101 : vector<32x32xf32>
    %c1_71 = arith.constant 1 : index
    %c0_72 = arith.constant 0 : index
    %103 = vector.load %arg5[%c1_71, %c0_72] : memref<5x32xf32, #tpu.memory_space<vmem>>, vector<1x32xf32>
    %104 = vector.shape_cast %103 : vector<1x32xf32> to vector<32xf32>
    %105 = vector.shape_cast %104 : vector<32xf32> to vector<1x32xf32>
    %106 = vector.broadcast %105 : vector<1x32xf32> to vector<32x32xf32>
    %107 = arith.mulf %102, %106 : vector<32x32xf32>
    %c1_73 = arith.constant 1 : index
    %c0_74 = arith.constant 0 : index
    %108 = vector.load %arg6[%c1_73, %c0_74] : memref<5x32xf32, #tpu.memory_space<vmem>>, vector<1x32xf32>
    %109 = vector.shape_cast %108 : vector<1x32xf32> to vector<32xf32>
    %110 = vector.shape_cast %109 : vector<32xf32> to vector<1x32xf32>
    %111 = vector.broadcast %110 : vector<1x32xf32> to vector<32x32xf32>
    %112 = arith.addf %107, %111 : vector<32x32xf32>
    %113 = vector.shape_cast %112 : vector<32x32xf32> to vector<2x16x32xf32>
    %c0_75 = arith.constant 0 : index
    %c8_76 = arith.constant 8 : index
    %c0_77 = arith.constant 0 : index
    %114 = vector.load %arg10[%c0_75, %c8_76, %c0_77] : memref<2x26x32xf32, #tpu.memory_space<vmem>>, vector<2x16x32xf32>
    tpu.vector_store %arg10[%c0_75, %c8_76, %c0_77], %113 {strides = array<i32>} : memref<2x26x32xf32, #tpu.memory_space<vmem>>, vector<2x16x32xf32>,
    %c0_78 = arith.constant 0 : index
    %c6_79 = arith.constant 6 : index
    %c0_80 = arith.constant 0 : index
    %115 = vector.load %arg10[%c0_78, %c6_79, %c0_80] : memref<2x26x32xf32, #tpu.memory_space<vmem>>, vector<2x16x32xf32>
    %116 = vector.shape_cast %115 : vector<2x16x32xf32> to vector<32x32xf32>
    %c0_81 = arith.constant 0 : index
    %c7_82 = arith.constant 7 : index
    %c0_83 = arith.constant 0 : index
    %117 = vector.load %arg10[%c0_81, %c7_82, %c0_83] : memref<2x26x32xf32, #tpu.memory_space<vmem>>, vector<2x16x32xf32>
    %118 = vector.shape_cast %117 : vector<2x16x32xf32> to vector<32x32xf32>
    %c0_84 = arith.constant 0 : index
    %c8_85 = arith.constant 8 : index
    %c0_86 = arith.constant 0 : index
    %119 = vector.load %arg10[%c0_84, %c8_85, %c0_86] : memref<2x26x32xf32, #tpu.memory_space<vmem>>, vector<2x16x32xf32>
    %120 = vector.shape_cast %119 : vector<2x16x32xf32> to vector<32x32xf32>
    %c0_87 = arith.constant 0 : index
    %c9_88 = arith.constant 9 : index
    %c0_89 = arith.constant 0 : index
    %121 = vector.load %arg10[%c0_87, %c9_88, %c0_89] : memref<2x26x32xf32, #tpu.memory_space<vmem>>, vector<2x16x32xf32>
    %122 = vector.shape_cast %121 : vector<2x16x32xf32> to vector<32x32xf32>
    %c0_90 = arith.constant 0 : index
    %c10_91 = arith.constant 10 : index
    %c0_92 = arith.constant 0 : index
    %123 = vector.load %arg10[%c0_90, %c10_91, %c0_92] : memref<2x26x32xf32, #tpu.memory_space<vmem>>, vector<2x16x32xf32>
    %124 = vector.shape_cast %123 : vector<2x16x32xf32> to vector<32x32xf32>
    %125 = tpu.concatenate %116, %118, %120, %122, %124 in 1 : vector<32x32xf32>, vector<32x32xf32>, vector<32x32xf32>, vector<32x32xf32>, vector<32x32xf32> -> vector<32x160xf32>
    %126 = arith.truncf %125 : vector<32x160xf32> to vector<32x160xbf16>
    %c2 = arith.constant 2 : index
    %c0_93 = arith.constant 0 : index
    %c0_94 = arith.constant 0 : index
    %127 = vector.load %arg3[%c2, %c0_93, %c0_94] : memref<5x160x32xbf16, #tpu.memory_space<vmem>>, vector<1x160x32xbf16>
    %128 = vector.shape_cast %127 : vector<1x160x32xbf16> to vector<160x32xbf16>
    %cst_95 = arith.constant dense<0.000000e+00> : vector<32x32xf32>
    %129 = tpu.matmul %126, %128, %cst_95 {dimension_numbers = #tpu.dot_dimension_numbers<[1], [0], [0], [1], [0, 0, 1, 1], [], []>} : vector<32x160xbf16>, vector<160x32xbf16>, vector<32x32xf32> -> vector<32x32xf32>
    %c2_96 = arith.constant 2 : index
    %c0_97 = arith.constant 0 : index
    %130 = vector.load %arg4[%c2_96, %c0_97] : memref<5x32xf32, #tpu.memory_space<vmem>>, vector<1x32xf32>
    %131 = vector.shape_cast %130 : vector<1x32xf32> to vector<32xf32>
    %132 = vector.shape_cast %131 : vector<32xf32> to vector<1x32xf32>
    %133 = vector.broadcast %132 : vector<1x32xf32> to vector<32x32xf32>
    %134 = arith.addf %129, %133 : vector<32x32xf32>
    %cst_98 = arith.constant 0.000000e+00 : f32
    %135 = vector.broadcast %cst_98 : f32 to vector<32x32xf32>
    %136 = arith.maximumf %134, %135 : vector<32x32xf32>
    %cst_99 = arith.constant dense<0.000000e+00> : vector<32xf32>
    %137 = vector.multi_reduction <add>, %136, %cst_99 [1] : vector<32x32xf32> to vector<32xf32>
    %138 = vector.shape_cast %137 : vector<32xf32> to vector<32x1xf32>
    %cst_100 = arith.constant 3.200000e+01 : f32
    %139 = vector.broadcast %cst_100 : f32 to vector<32x1xf32>
    %140 = arith.divf %138, %139 : vector<32x1xf32>
    %141 = vector.broadcast %140 : vector<32x1xf32> to vector<32x32xf32>
    %142 = arith.subf %136, %141 : vector<32x32xf32>
    %143 = arith.mulf %142, %142 : vector<32x32xf32>
    %cst_101 = arith.constant dense<0.000000e+00> : vector<32xf32>
    %144 = vector.multi_reduction <add>, %143, %cst_101 [1] : vector<32x32xf32> to vector<32xf32>
    %145 = vector.shape_cast %144 : vector<32xf32> to vector<32x1xf32>
    %cst_102 = arith.constant 3.200000e+01 : f32
    %146 = vector.broadcast %cst_102 : f32 to vector<32x1xf32>
    %147 = arith.divf %145, %146 : vector<32x1xf32>
    %148 = vector.broadcast %140 : vector<32x1xf32> to vector<32x32xf32>
    %149 = arith.subf %136, %148 : vector<32x32xf32>
    %cst_103 = arith.constant 9.99999996E-13 : f32
    %150 = vector.broadcast %cst_103 : f32 to vector<32x1xf32>
    %151 = arith.addf %147, %150 : vector<32x1xf32>
    %152 = math.rsqrt %151 : vector<32x1xf32>
    %153 = vector.broadcast %152 : vector<32x1xf32> to vector<32x32xf32>
    %154 = arith.mulf %149, %153 : vector<32x32xf32>
    %c2_104 = arith.constant 2 : index
    %c0_105 = arith.constant 0 : index
    %155 = vector.load %arg5[%c2_104, %c0_105] : memref<5x32xf32, #tpu.memory_space<vmem>>, vector<1x32xf32>
    %156 = vector.shape_cast %155 : vector<1x32xf32> to vector<32xf32>
    %157 = vector.shape_cast %156 : vector<32xf32> to vector<1x32xf32>
    %158 = vector.broadcast %157 : vector<1x32xf32> to vector<32x32xf32>
    %159 = arith.mulf %154, %158 : vector<32x32xf32>
    %c2_106 = arith.constant 2 : index
    %c0_107 = arith.constant 0 : index
    %160 = vector.load %arg6[%c2_106, %c0_107] : memref<5x32xf32, #tpu.memory_space<vmem>>, vector<1x32xf32>
    %161 = vector.shape_cast %160 : vector<1x32xf32> to vector<32xf32>
    %162 = vector.shape_cast %161 : vector<32xf32> to vector<1x32xf32>
    %163 = vector.broadcast %162 : vector<1x32xf32> to vector<32x32xf32>
    %164 = arith.addf %159, %163 : vector<32x32xf32>
    %165 = vector.shape_cast %164 : vector<32x32xf32> to vector<2x16x32xf32>
    %c0_108 = arith.constant 0 : index
    %c8_109 = arith.constant 8 : index
    %c0_110 = arith.constant 0 : index
    %166 = vector.load %arg10[%c0_108, %c8_109, %c0_110] : memref<2x26x32xf32, #tpu.memory_space<vmem>>, vector<2x16x32xf32>
    tpu.vector_store %arg10[%c0_108, %c8_109, %c0_110], %165 {strides = array<i32>} : memref<2x26x32xf32, #tpu.memory_space<vmem>>, vector<2x16x32xf32>,
    %c0_111 = arith.constant 0 : index
    %c6_112 = arith.constant 6 : index
    %c0_113 = arith.constant 0 : index
    %167 = vector.load %arg10[%c0_111, %c6_112, %c0_113] : memref<2x26x32xf32, #tpu.memory_space<vmem>>, vector<2x16x32xf32>
    %168 = vector.shape_cast %167 : vector<2x16x32xf32> to vector<32x32xf32>
    %c0_114 = arith.constant 0 : index
    %c7_115 = arith.constant 7 : index
    %c0_116 = arith.constant 0 : index
    %169 = vector.load %arg10[%c0_114, %c7_115, %c0_116] : memref<2x26x32xf32, #tpu.memory_space<vmem>>, vector<2x16x32xf32>
    %170 = vector.shape_cast %169 : vector<2x16x32xf32> to vector<32x32xf32>
    %c0_117 = arith.constant 0 : index
    %c8_118 = arith.constant 8 : index
    %c0_119 = arith.constant 0 : index
    %171 = vector.load %arg10[%c0_117, %c8_118, %c0_119] : memref<2x26x32xf32, #tpu.memory_space<vmem>>, vector<2x16x32xf32>
    %172 = vector.shape_cast %171 : vector<2x16x32xf32> to vector<32x32xf32>
    %c0_120 = arith.constant 0 : index
    %c9_121 = arith.constant 9 : index
    %c0_122 = arith.constant 0 : index
    %173 = vector.load %arg10[%c0_120, %c9_121, %c0_122] : memref<2x26x32xf32, #tpu.memory_space<vmem>>, vector<2x16x32xf32>
    %174 = vector.shape_cast %173 : vector<2x16x32xf32> to vector<32x32xf32>
    %c0_123 = arith.constant 0 : index
    %c10_124 = arith.constant 10 : index
    %c0_125 = arith.constant 0 : index
    %175 = vector.load %arg10[%c0_123, %c10_124, %c0_125] : memref<2x26x32xf32, #tpu.memory_space<vmem>>, vector<2x16x32xf32>
    %176 = vector.shape_cast %175 : vector<2x16x32xf32> to vector<32x32xf32>
    %177 = tpu.concatenate %168, %170, %172, %174, %176 in 1 : vector<32x32xf32>, vector<32x32xf32>, vector<32x32xf32>, vector<32x32xf32>, vector<32x32xf32> -> vector<32x160xf32>
    %178 = arith.truncf %177 : vector<32x160xf32> to vector<32x160xbf16>
    %c3 = arith.constant 3 : index
    %c0_126 = arith.constant 0 : index
    %c0_127 = arith.constant 0 : index
    %179 = vector.load %arg3[%c3, %c0_126, %c0_127] : memref<5x160x32xbf16, #tpu.memory_space<vmem>>, vector<1x160x32xbf16>
    %180 = vector.shape_cast %179 : vector<1x160x32xbf16> to vector<160x32xbf16>
    %cst_128 = arith.constant dense<0.000000e+00> : vector<32x32xf32>
    %181 = tpu.matmul %178, %180, %cst_128 {dimension_numbers = #tpu.dot_dimension_numbers<[1], [0], [0], [1], [0, 0, 1, 1], [], []>} : vector<32x160xbf16>, vector<160x32xbf16>, vector<32x32xf32> -> vector<32x32xf32>
    %c3_129 = arith.constant 3 : index
    %c0_130 = arith.constant 0 : index
    %182 = vector.load %arg4[%c3_129, %c0_130] : memref<5x32xf32, #tpu.memory_space<vmem>>, vector<1x32xf32>
    %183 = vector.shape_cast %182 : vector<1x32xf32> to vector<32xf32>
    %184 = vector.shape_cast %183 : vector<32xf32> to vector<1x32xf32>
    %185 = vector.broadcast %184 : vector<1x32xf32> to vector<32x32xf32>
    %186 = arith.addf %181, %185 : vector<32x32xf32>
    %cst_131 = arith.constant 0.000000e+00 : f32
    %187 = vector.broadcast %cst_131 : f32 to vector<32x32xf32>
    %188 = arith.maximumf %186, %187 : vector<32x32xf32>
    %cst_132 = arith.constant dense<0.000000e+00> : vector<32xf32>
    %189 = vector.multi_reduction <add>, %188, %cst_132 [1] : vector<32x32xf32> to vector<32xf32>
    %190 = vector.shape_cast %189 : vector<32xf32> to vector<32x1xf32>
    %cst_133 = arith.constant 3.200000e+01 : f32
    %191 = vector.broadcast %cst_133 : f32 to vector<32x1xf32>
    %192 = arith.divf %190, %191 : vector<32x1xf32>
    %193 = vector.broadcast %192 : vector<32x1xf32> to vector<32x32xf32>
    %194 = arith.subf %188, %193 : vector<32x32xf32>
    %195 = arith.mulf %194, %194 : vector<32x32xf32>
    %cst_134 = arith.constant dense<0.000000e+00> : vector<32xf32>
    %196 = vector.multi_reduction <add>, %195, %cst_134 [1] : vector<32x32xf32> to vector<32xf32>
    %197 = vector.shape_cast %196 : vector<32xf32> to vector<32x1xf32>
    %cst_135 = arith.constant 3.200000e+01 : f32
    %198 = vector.broadcast %cst_135 : f32 to vector<32x1xf32>
    %199 = arith.divf %197, %198 : vector<32x1xf32>
    %200 = vector.broadcast %192 : vector<32x1xf32> to vector<32x32xf32>
    %201 = arith.subf %188, %200 : vector<32x32xf32>
    %cst_136 = arith.constant 9.99999996E-13 : f32
    %202 = vector.broadcast %cst_136 : f32 to vector<32x1xf32>
    %203 = arith.addf %199, %202 : vector<32x1xf32>
    %204 = math.rsqrt %203 : vector<32x1xf32>
    %205 = vector.broadcast %204 : vector<32x1xf32> to vector<32x32xf32>
    %206 = arith.mulf %201, %205 : vector<32x32xf32>
    %c3_137 = arith.constant 3 : index
    %c0_138 = arith.constant 0 : index
    %207 = vector.load %arg5[%c3_137, %c0_138] : memref<5x32xf32, #tpu.memory_space<vmem>>, vector<1x32xf32>
    %208 = vector.shape_cast %207 : vector<1x32xf32> to vector<32xf32>
    %209 = vector.shape_cast %208 : vector<32xf32> to vector<1x32xf32>
    %210 = vector.broadcast %209 : vector<1x32xf32> to vector<32x32xf32>
    %211 = arith.mulf %206, %210 : vector<32x32xf32>
    %c3_139 = arith.constant 3 : index
    %c0_140 = arith.constant 0 : index
    %212 = vector.load %arg6[%c3_139, %c0_140] : memref<5x32xf32, #tpu.memory_space<vmem>>, vector<1x32xf32>
    %213 = vector.shape_cast %212 : vector<1x32xf32> to vector<32xf32>
    %214 = vector.shape_cast %213 : vector<32xf32> to vector<1x32xf32>
    %215 = vector.broadcast %214 : vector<1x32xf32> to vector<32x32xf32>
    %216 = arith.addf %211, %215 : vector<32x32xf32>
    %217 = vector.shape_cast %216 : vector<32x32xf32> to vector<2x16x32xf32>
    %c0_141 = arith.constant 0 : index
    %c8_142 = arith.constant 8 : index
    %c0_143 = arith.constant 0 : index
    %218 = vector.load %arg10[%c0_141, %c8_142, %c0_143] : memref<2x26x32xf32, #tpu.memory_space<vmem>>, vector<2x16x32xf32>
    tpu.vector_store %arg10[%c0_141, %c8_142, %c0_143], %217 {strides = array<i32>} : memref<2x26x32xf32, #tpu.memory_space<vmem>>, vector<2x16x32xf32>,
    %c0_144 = arith.constant 0 : index
    %c6_145 = arith.constant 6 : index
    %c0_146 = arith.constant 0 : index
    %219 = vector.load %arg10[%c0_144, %c6_145, %c0_146] : memref<2x26x32xf32, #tpu.memory_space<vmem>>, vector<2x16x32xf32>
    %220 = vector.shape_cast %219 : vector<2x16x32xf32> to vector<32x32xf32>
    %c0_147 = arith.constant 0 : index
    %c7_148 = arith.constant 7 : index
    %c0_149 = arith.constant 0 : index
    %221 = vector.load %arg10[%c0_147, %c7_148, %c0_149] : memref<2x26x32xf32, #tpu.memory_space<vmem>>, vector<2x16x32xf32>
    %222 = vector.shape_cast %221 : vector<2x16x32xf32> to vector<32x32xf32>
    %c0_150 = arith.constant 0 : index
    %c8_151 = arith.constant 8 : index
    %c0_152 = arith.constant 0 : index
    %223 = vector.load %arg10[%c0_150, %c8_151, %c0_152] : memref<2x26x32xf32, #tpu.memory_space<vmem>>, vector<2x16x32xf32>
    %224 = vector.shape_cast %223 : vector<2x16x32xf32> to vector<32x32xf32>
    %c0_153 = arith.constant 0 : index
    %c9_154 = arith.constant 9 : index
    %c0_155 = arith.constant 0 : index
    %225 = vector.load %arg10[%c0_153, %c9_154, %c0_155] : memref<2x26x32xf32, #tpu.memory_space<vmem>>, vector<2x16x32xf32>
    %226 = vector.shape_cast %225 : vector<2x16x32xf32> to vector<32x32xf32>
    %c0_156 = arith.constant 0 : index
    %c10_157 = arith.constant 10 : index
    %c0_158 = arith.constant 0 : index
    %227 = vector.load %arg10[%c0_156, %c10_157, %c0_158] : memref<2x26x32xf32, #tpu.memory_space<vmem>>, vector<2x16x32xf32>
    %228 = vector.shape_cast %227 : vector<2x16x32xf32> to vector<32x32xf32>
    %229 = tpu.concatenate %220, %222, %224, %226, %228 in 1 : vector<32x32xf32>, vector<32x32xf32>, vector<32x32xf32>, vector<32x32xf32>, vector<32x32xf32> -> vector<32x160xf32>
    %230 = arith.truncf %229 : vector<32x160xf32> to vector<32x160xbf16>
    %c4 = arith.constant 4 : index
    %c0_159 = arith.constant 0 : index
    %c0_160 = arith.constant 0 : index
    %231 = vector.load %arg3[%c4, %c0_159, %c0_160] : memref<5x160x32xbf16, #tpu.memory_space<vmem>>, vector<1x160x32xbf16>
    %232 = vector.shape_cast %231 : vector<1x160x32xbf16> to vector<160x32xbf16>
    %cst_161 = arith.constant dense<0.000000e+00> : vector<32x32xf32>
    %233 = tpu.matmul %230, %232, %cst_161 {dimension_numbers = #tpu.dot_dimension_numbers<[1], [0], [0], [1], [0, 0, 1, 1], [], []>} : vector<32x160xbf16>, vector<160x32xbf16>, vector<32x32xf32> -> vector<32x32xf32>
    %c4_162 = arith.constant 4 : index
    %c0_163 = arith.constant 0 : index
    %234 = vector.load %arg4[%c4_162, %c0_163] : memref<5x32xf32, #tpu.memory_space<vmem>>, vector<1x32xf32>
    %235 = vector.shape_cast %234 : vector<1x32xf32> to vector<32xf32>
    %236 = vector.shape_cast %235 : vector<32xf32> to vector<1x32xf32>
    %237 = vector.broadcast %236 : vector<1x32xf32> to vector<32x32xf32>
    %238 = arith.addf %233, %237 : vector<32x32xf32>
    %cst_164 = arith.constant 0.000000e+00 : f32
    %239 = vector.broadcast %cst_164 : f32 to vector<32x32xf32>
    %240 = arith.maximumf %238, %239 : vector<32x32xf32>
    %cst_165 = arith.constant dense<0.000000e+00> : vector<32xf32>
    %241 = vector.multi_reduction <add>, %240, %cst_165 [1] : vector<32x32xf32> to vector<32xf32>
    %242 = vector.shape_cast %241 : vector<32xf32> to vector<32x1xf32>
    %cst_166 = arith.constant 3.200000e+01 : f32
    %243 = vector.broadcast %cst_166 : f32 to vector<32x1xf32>
    %244 = arith.divf %242, %243 : vector<32x1xf32>
    %245 = vector.broadcast %244 : vector<32x1xf32> to vector<32x32xf32>
    %246 = arith.subf %240, %245 : vector<32x32xf32>
    %247 = arith.mulf %246, %246 : vector<32x32xf32>
    %cst_167 = arith.constant dense<0.000000e+00> : vector<32xf32>
    %248 = vector.multi_reduction <add>, %247, %cst_167 [1] : vector<32x32xf32> to vector<32xf32>
    %249 = vector.shape_cast %248 : vector<32xf32> to vector<32x1xf32>
    %cst_168 = arith.constant 3.200000e+01 : f32
    %250 = vector.broadcast %cst_168 : f32 to vector<32x1xf32>
    %251 = arith.divf %249, %250 : vector<32x1xf32>
    %252 = vector.broadcast %244 : vector<32x1xf32> to vector<32x32xf32>
    %253 = arith.subf %240, %252 : vector<32x32xf32>
    %cst_169 = arith.constant 9.99999996E-13 : f32
    %254 = vector.broadcast %cst_169 : f32 to vector<32x1xf32>
    %255 = arith.addf %251, %254 : vector<32x1xf32>
    %256 = math.rsqrt %255 : vector<32x1xf32>
    %257 = vector.broadcast %256 : vector<32x1xf32> to vector<32x32xf32>
    %258 = arith.mulf %253, %257 : vector<32x32xf32>
    %c4_170 = arith.constant 4 : index
    %c0_171 = arith.constant 0 : index
    %259 = vector.load %arg5[%c4_170, %c0_171] : memref<5x32xf32, #tpu.memory_space<vmem>>, vector<1x32xf32>
    %260 = vector.shape_cast %259 : vector<1x32xf32> to vector<32xf32>
    %261 = vector.shape_cast %260 : vector<32xf32> to vector<1x32xf32>
    %262 = vector.broadcast %261 : vector<1x32xf32> to vector<32x32xf32>
    %263 = arith.mulf %258, %262 : vector<32x32xf32>
    %c4_172 = arith.constant 4 : index
    %c0_173 = arith.constant 0 : index
    %264 = vector.load %arg6[%c4_172, %c0_173] : memref<5x32xf32, #tpu.memory_space<vmem>>, vector<1x32xf32>
    %265 = vector.shape_cast %264 : vector<1x32xf32> to vector<32xf32>
    %266 = vector.shape_cast %265 : vector<32xf32> to vector<1x32xf32>
    %267 = vector.broadcast %266 : vector<1x32xf32> to vector<32x32xf32>
    %268 = arith.addf %263, %267 : vector<32x32xf32>
    %c0_174 = arith.constant 0 : index
    %c0_175 = arith.constant 0 : index
    %269 = vector.load %arg7[%c0_174, %c0_175] : memref<2x32xbf16, #tpu.memory_space<vmem>>, vector<2x32xbf16>
    %270 = arith.truncf %268 : vector<32x32xf32> to vector<32x32xbf16>
    %cst_176 = arith.constant dense<0.000000e+00> : vector<2x32xf32>
    %271 = tpu.matmul %269, %270, %cst_176 {dimension_numbers = #tpu.dot_dimension_numbers<[1], [1], [0], [0], [0, 0, 1, 0], [], []>} : vector<2x32xbf16>, vector<32x32xbf16>, vector<2x32xf32> -> vector<2x32xf32>
    %c0_177 = arith.constant 0 : index
    %c0_178 = arith.constant 0 : index
    %272 = vector.load %arg8[%c0_177, %c0_178] : memref<2x1xf32, #tpu.memory_space<vmem>>, vector<2x1xf32>
    %273 = vector.broadcast %272 : vector<2x1xf32> to vector<2x32xf32>
    %274 = arith.addf %271, %273 : vector<2x32xf32>
    %c0_179 = arith.constant 0 : index
    %c0_180 = arith.constant 0 : index
    %275 = vector.load %arg9[%c0_179, %c0_180] : memref<2x32xf32, #tpu.memory_space<vmem>>, vector<2x32xf32>
    tpu.vector_store %arg9[%c0_179, %c0_180], %274 {strides = array<i32>} : memref<2x32xf32, #tpu.memory_space<vmem>>, vector<2x32xf32>,
    return
  }
}

</mosaic_0001>

<llo_original>
// kernel: tpu_custom_call.1
$region0: #{tpu_custom_call.1}
  #allocation0 [shape = 'u32[]', space=smem, size = 0x4, offset = 0x4, fixed_abs, tag = 'smem constant byte address 0x4 - core index']
  #allocation1 [shape = 'u32[144,128]{1,0:T(1,128)}', space=vmem, size = 0x12000, scoped, tag = 'internal scratch']
  #allocation2 [shape = 'f32[2,26,32]{2,1,0:T(8,128)}', space=vmem, size = 0x8000, scoped, tag = 'scratch operand']
  #allocation3 [shape = 'f32[1,1]{1,0:T(1,128)S(6)}', space=smem, size = 0x200, scoped, tag = 'scoped memory for tpu_custom_call.1']
  %s0 = inlined_call_operand.<no memory space> [shape: f32[1,1], index: 0, kind: input, shape index: {}]
  %s1 = inlined_call_operand.vmem [shape: f32[2,16,32], index: 1, kind: input, shape index: {}]
  %s2 = inlined_call_operand.vmem [shape: f32[2,16,32], index: 2, kind: input, shape index: {}]
  %s3 = inlined_call_operand.vmem [shape: bf16[5,160,32], index: 3, kind: input, shape index: {}]
  %s4 = inlined_call_operand.vmem [shape: f32[5,32], index: 4, kind: input, shape index: {}]
  %s5 = inlined_call_operand.vmem [shape: f32[5,32], index: 5, kind: input, shape index: {}]
  %s6 = inlined_call_operand.vmem [shape: f32[5,32], index: 6, kind: input, shape index: {}]
  %s7 = inlined_call_operand.vmem [shape: bf16[2,32], index: 7, kind: input, shape index: {}]
  %s8 = inlined_call_operand.vmem [shape: f32[2,1], index: 8, kind: input, shape index: {}]
  %s9 = inlined_call_operand.hbm [shape: f32[2,32], index: 9, kind: output, shape index: {}]
  %s10 = sld [smem:[#allocation0]]
  $region46: #{tpu_custom_call.1} parent=0
    _
  %s12 = ssub.s32 1, %s10
  %s13 = scalar_select 0, %s12, %s10
  %14 = sst [smem:[#allocation3]] %s0
  $region1: #{tpu_custom_call.1} parent=0
    #allocation4 [shape = 'u8[1024]{0}', space=vmem, size = 0x400, scoped, tag = 'output window, operand 0, single buffered']
    #allocation5 [shape = 's32[1]{0}', space=sflag, size = 0x4, scoped, tag = 'scoped memory for tpu_custom_call.1']
    %15 = vsyncpa [#allocation5], 0
    // Predicated region
    $region2: #{tpu_custom_call.1} parent=1 // pred_check
      _
    $region3: #{tpu_custom_call.1} parent=1 // pred_check_branch
      %17 = sbr.rel (0) target = $region5
    $region4: #{tpu_custom_call.1} parent=1 // pred_region
      _
    $region5: #{tpu_custom_call.1} parent=1 // pred_fallthru
      _
    // Predicated region
    $region6: #{tpu_custom_call.1} parent=1 // pred_check
      _
    $region7: #{tpu_custom_call.1} parent=1 // pred_check_branch
      %19 = sbr.rel (0) target = $region9
    $region8: #{tpu_custom_call.1} parent=1 // pred_region
      _
    $region9: #{tpu_custom_call.1} parent=1 // pred_fallthru
      _
    // Predicated region
    $region10: #{tpu_custom_call.1} parent=1 // pred_check
      _
    $region11: #{tpu_custom_call.1} parent=1 // pred_check_branch
      %21 = sbr.rel (0) target = $region13
    $region12: #{tpu_custom_call.1} parent=1 // pred_region
      _
    $region13: #{tpu_custom_call.1} parent=1 // pred_fallthru
      _
    // Predicated region
    $region14: #{tpu_custom_call.1} parent=1 // pred_check
      _
    $region15: #{tpu_custom_call.1} parent=1 // pred_check_branch
      %23 = sbr.rel (0) target = $region17
    $region16: #{tpu_custom_call.1} parent=1 // pred_region
      _
    $region17: #{tpu_custom_call.1} parent=1 // pred_fallthru
      _
    // Predicated region
    $region18: #{tpu_custom_call.1} parent=1 // pred_check
      _
    $region19: #{tpu_custom_call.1} parent=1 // pred_check_branch
      %25 = sbr.rel (0) target = $region21
    $region20: #{tpu_custom_call.1} parent=1 // pred_region
      _
    $region21: #{tpu_custom_call.1} parent=1 // pred_fallthru
      _
    // Predicated region
    $region22: #{tpu_custom_call.1} parent=1 // pred_check
      _
    $region23: #{tpu_custom_call.1} parent=1 // pred_check_branch
      %27 = sbr.rel (0) target = $region25
    $region24: #{tpu_custom_call.1} parent=1 // pred_region
      _
    $region25: #{tpu_custom_call.1} parent=1 // pred_fallthru
      _
    // Predicated region
    $region26: #{tpu_custom_call.1} parent=1 // pred_check
      _
    $region27: #{tpu_custom_call.1} parent=1 // pred_check_branch
      %29 = sbr.rel (0) target = $region29
    $region28: #{tpu_custom_call.1} parent=1 // pred_region
      _
    $region29: #{tpu_custom_call.1} parent=1 // pred_fallthru
      _
    // Predicated region
    $region30: #{tpu_custom_call.1} parent=1 // pred_check
      _
    $region31: #{tpu_custom_call.1} parent=1 // pred_check_branch
      %31 = sbr.rel (0) target = $region33
    $region32: #{tpu_custom_call.1} parent=1 // pred_region
      _
    $region33: #{tpu_custom_call.1} parent=1 // pred_fallthru
      _
    // Predicated region
    $region34: #{tpu_custom_call.1} parent=1 // pred_check
      _
    $region35: #{tpu_custom_call.1} parent=1 // pred_check_branch
      %33 = sbr.rel (0) target = $region37
    $region36: #{tpu_custom_call.1} parent=1 // pred_region
      _
    $region37: #{tpu_custom_call.1} parent=1 // pred_fallthru
      _
    %s35 = sld [smem:[#allocation3]]
    %v36 = vld [vmem:[%s1] sm:$0xff]
    %v37 = vld [vmem:[%s1 + $0x8] sm:$0xff]
    %v38 = vld [vmem:[%s1 + $0x10] sm:$0xff]
    %v39 = vld [vmem:[%s1 + $0x18] sm:$0xff]
    %v40 = vld [vmem:[%s2] sm:$0xff]
    %v41 = vld [vmem:[%s2 + $0x8] sm:$0xff]
    %v42 = vld [vmem:[%s2 + $0x10] sm:$0xff]
    %v43 = vld [vmem:[%s2 + $0x18] sm:$0xff]
    %v44 = vstv %s35
    %v45 = vmul.f32 %v44, %v40
    %v46 = vmul.f32 %v44, %v41
    %v47 = vmul.f32 %v44, %v42
    %v48 = vmul.f32 %v44, %v43
    %v49 = vadd.f32 %v36, %v45
    %v50 = vadd.f32 %v37, %v46
    %v51 = vadd.f32 %v38, %v47
    %v52 = vadd.f32 %v39, %v48
    %vm53 = vcmask 261120
    %54 = vst.msk [vmem:[#allocation2] sm:$0xff] %vm53, 0.0
    %55 = vst.msk [vmem:[#allocation2 + $0x20] sm:$0xff] %vm53, 0.0
    %vm56 = vcmask 254976
    %57 = vst.msk [vmem:[#allocation2 + $0x18] sm:$0x3] %vm56, 0.0
    %58 = vst.msk [vmem:[#allocation2 + $0x38] sm:$0x3] %vm56, 0.0
    %59 = vst.msk [vmem:[#allocation2 + $0x8] sm:$0xff] %vm53, %v49
    %60 = vst.msk [vmem:[#allocation2 + $0x10] sm:$0xff] %vm53, %v50
    %61 = vst.msk [vmem:[#allocation2 + $0x28] sm:$0xff] %vm53, %v51
    %62 = vst.msk [vmem:[#allocation2 + $0x30] sm:$0xff] %vm53, %v52
    %v63 = vld [vmem:[#allocation2 + $0x6] sm:$0xff]
    %v64 = vld [vmem:[#allocation2 + $0xe] sm:$0xff]
    %v65 = vld [vmem:[#allocation2 + $0x26] sm:$0xff]
    %v66 = vld [vmem:[#allocation2 + $0x2e] sm:$0xff]
    %v67 = vld [vmem:[#allocation2 + $0x7] sm:$0xff]
    %v68 = vld [vmem:[#allocation2 + $0xf] sm:$0xff]
    %v69 = vld [vmem:[#allocation2 + $0x27] sm:$0xff]
    %v70 = vld [vmem:[#allocation2 + $0x2f] sm:$0xff]
    %v71 = vld [vmem:[#allocation2 + $0x8] sm:$0xff]
    %v72 = vld [vmem:[#allocation2 + $0x10] sm:$0xff]
    %v73 = vld [vmem:[#allocation2 + $0x28] sm:$0xff]
    %v74 = vld [vmem:[#allocation2 + $0x30] sm:$0xff]
    %v75 = vld [vmem:[#allocation2 + $0x9] sm:$0xff]
    %v76 = vld [vmem:[#allocation2 + $0x11] sm:$0xff]
    %v77 = vld [vmem:[#allocation2 + $0x29] sm:$0xff]
    %v78 = vld [vmem:[#allocation2 + $0x31] sm:$0xff]
    %v79 = vld [vmem:[#allocation2 + $0xa] sm:$0xff]
    %v80 = vld [vmem:[#allocation2 + $0x12] sm:$0xff]
    %v81 = vld [vmem:[#allocation2 + $0x2a] sm:$0xff]
    %v82 = vld [vmem:[#allocation2 + $0x32] sm:$0xff]
    %87 = vrot.lane.b32.xlu0 %v67, 32
    %v88 = vpop.permute.xlu0 %87
    %89 = vrot.lane.b32.xlu0 %v68, 32
    %v90 = vpop.permute.xlu0 %89
    %91 = vrot.lane.b32.xlu0 %v69, 32
    %v92 = vpop.permute.xlu0 %91
    %93 = vrot.lane.b32.xlu0 %v70, 32
    %v94 = vpop.permute.xlu0 %93
    %103 = vrot.lane.b32.xlu0 %v71, 64
    %v104 = vpop.permute.xlu0 %103
    %105 = vrot.lane.b32.xlu0 %v72, 64
    %v106 = vpop.permute.xlu0 %105
    %107 = vrot.lane.b32.xlu0 %v73, 64
    %v108 = vpop.permute.xlu0 %107
    %109 = vrot.lane.b32.xlu0 %v74, 64
    %v110 = vpop.permute.xlu0 %109
    %119 = vrot.lane.b32.xlu0 %v75, 96
    %v120 = vpop.permute.xlu0 %119
    %121 = vrot.lane.b32.xlu0 %v76, 96
    %v122 = vpop.permute.xlu0 %121
    %123 = vrot.lane.b32.xlu0 %v77, 96
    %v124 = vpop.permute.xlu0 %123
    %125 = vrot.lane.b32.xlu0 %v78, 96
    %v126 = vpop.permute.xlu0 %125
    %v131 = vsel %vm53, %v63, %v88
    %v132 = vsel %vm53, %v64, %v90
    %v133 = vsel %vm53, %v65, %v92
    %v134 = vsel %vm53, %v66, %v94
    %vm135 = vcmask 523264
    %v136 = vsel %vm135, %v131, %v104
    %v137 = vsel %vm135, %v132, %v106
    %v138 = vsel %vm135, %v133, %v108
    %v139 = vsel %vm135, %v134, %v110
    %vm140 = vcmask 785408
    %v141 = vsel %vm140, %v136, %v120
    %v142 = vsel %vm140, %v137, %v122
    %v143 = vsel %vm140, %v138, %v124
    %v144 = vsel %vm140, %v139, %v126
    %v145 = vpack.c.bf16 %v142, %v141
    %v146 = vpack.c.bf16 %v80, %v79
    %v147 = vpack.c.bf16 %v144, %v143
    %v148 = vpack.c.bf16 %v82, %v81
    %v149 = vld [vmem:[%s3] sm:$0xf]
    %v150 = vld [vmem:[%s3 + $0x4] sm:$0xf]
    %v151 = vld [vmem:[%s3 + $0x8] sm:$0xf]
    %v152 = vld [vmem:[%s3 + $0xc] sm:$0xf]
    %v153 = vld [vmem:[%s3 + $0x10] sm:$0xf]
    %v154 = vld [vmem:[%s3 + $0x14] sm:$0xf]
    %v155 = vld [vmem:[%s3 + $0x18] sm:$0xf]
    %v156 = vld [vmem:[%s3 + $0x1c] sm:$0xf]
    %v157 = vld [vmem:[%s3 + $0x20] sm:$0xf]
    %v158 = vld [vmem:[%s3 + $0x24] sm:$0xf]
    %v159 = vld [vmem:[%s3 + $0x28] sm:$0xf]
    %v160 = vld [vmem:[%s3 + $0x2c] sm:$0xf]
    %v161 = vld [vmem:[%s3 + $0x30] sm:$0xf]
    %v162 = vld [vmem:[%s3 + $0x34] sm:$0xf]
    %v163 = vld [vmem:[%s3 + $0x38] sm:$0xf]
    %v164 = vld [vmem:[%s3 + $0x3c] sm:$0xf]
    %v165 = vld [vmem:[%s3 + $0x40] sm:$0xf]
    %v166 = vld [vmem:[%s3 + $0x44] sm:$0xf]
    %v167 = vld [vmem:[%s3 + $0x48] sm:$0xf]
    %v168 = vld [vmem:[%s3 + $0x4c] sm:$0xf]
    %v169 = vld [vmem:[%s4] sm:$0x1]
    %v170 = vlaneseq
    %v171 = vshrl.u32 %v170, 7
    %v172 = vsub.s32 0, %v171
    %v173 = vrot.slane %v169, %v172
    %v194 = vunpack.c.l.b16 %v149
    %v195 = vunpack.c.l.b16 %v150
    %v196 = vunpack.c.l.b16 %v151
    %v197 = vunpack.c.l.b16 %v152
    %v198 = vunpack.c.l.b16 %v153
    %v199 = vunpack.c.l.b16 %v154
    %v200 = vunpack.c.l.b16 %v155
    %v201 = vunpack.c.l.b16 %v156
    %v202 = vunpack.c.l.b16 %v157
    %v203 = vunpack.c.l.b16 %v158
    %v204 = vunpack.c.l.b16 %v159
    %v205 = vunpack.c.l.b16 %v160
    %v206 = vunpack.c.l.b16 %v161
    %v207 = vunpack.c.l.b16 %v162
    %v208 = vunpack.c.l.b16 %v163
    %v209 = vunpack.c.l.b16 %v164
    %v210 = vunpack.c.l.b16 %v165
    %v211 = vunpack.c.l.b16 %v166
    %v212 = vunpack.c.l.b16 %v167
    %v213 = vunpack.c.l.b16 %v168
    %v214 = vpack.c.b16 %v195, %v194
    %v215 = vpack.c.b16 %v197, %v196
    %v216 = vpack.c.b16 %v199, %v198
    %v217 = vpack.c.b16 %v201, %v200
    %v218 = vpack.c.b16 %v203, %v202
    %v219 = vpack.c.b16 %v205, %v204
    %v220 = vpack.c.b16 %v207, %v206
    %v221 = vpack.c.b16 %v209, %v208
    %v222 = vpack.c.b16 %v211, %v210
    %v223 = vpack.c.b16 %v213, %v212
    %v235 = vsel %vm53, %v146, 0
    %v238 = vsel %vm53, %v148, 0
    %240 = vmatprep.subr.bf16.mxu0 0
    %241 = vmatpush1.bf16.msra.mxu0 %v221
    %242 = vmatprep.subr.bf16.mxu0 0
    %243 = vmatpush1.bf16.msra.mxu0 %v220
    %244 = vmatprep.subr.bf16.mxu0 0
    %245 = vmatpush1.bf16.msra.mxu0 %v219
    %246 = vmatprep.subr.bf16.mxu0 0
    %247 = vmatpush1.bf16.msra.mxu0 %v218
    %248 = vmatprep.subr.bf16.mxu0 0
    %249 = vmatpush1.bf16.msra.mxu0 %v217
    %250 = vmatprep.subr.bf16.mxu0 0
    %251 = vmatpush1.bf16.msra.mxu0 %v216
    %252 = vmatprep.subr.bf16.mxu0 0
    %253 = vmatpush1.bf16.msra.mxu0 %v215
    %254 = vmatprep.subr.bf16.mxu0 0
    %255 = vmatpush1.bf16.msra.mxu0 %v214
    %256 = vmatprep.subr.bf16.mxu0 0
    %257 = vmatpush2.bf16.msra.mxu0 0
    %258 = vmatprep.subr.bf16.mxu0 0
    %259 = vmatpush2.bf16.msra.mxu0 0
    %260 = vmatprep.subr.bf16.mxu0 0
    %261 = vmatpush2.bf16.msra.mxu0 0
    %262 = vmatprep.subr.bf16.mxu0 0
    %263 = vmatpush2.bf16.msra.mxu0 0
    %264 = vmatprep.subr.bf16.mxu0 0
    %265 = vmatpush2.bf16.msra.mxu0 0
    %266 = vmatprep.subr.bf16.mxu0 0
    %267 = vmatpush2.bf16.msra.mxu0 0
    %268 = vmatprep.subr.bf16.mxu0 0
    %269 = vmatpush2.bf16.msra.mxu0 %v223
    %270 = vmatprep.subr.bf16.mxu0 0
    %271 = vmatpush2.bf16.msra.mxu0 %v222
    %272 = vmatprep.mubr.bf16.mxu0 %v235
    %273 = vmatmul.mubr.bf16.gmra.mxu0 %v145
    %v274 = vpop.f32.mrf.mxu0
    %v275 = vadd.f32 %v173, %v274
    %v276 = vpop.f32.mrf.mxu0
    %v277 = vpop.f32.mrf.mxu0
    %v278 = vadd.f32 %v173, %v277
    %v279 = vpop.f32.mrf.mxu0
    %280 = vmatprep.mubr.bf16.mxu0 %v238
    %281 = vmatmul.mubr.bf16.gmra.mxu0 %v147
    %v282 = vpop.f32.mrf.mxu0
    %v283 = vadd.f32 %v173, %v282
    %v284 = vpop.f32.mrf.mxu0
    %v285 = vpop.f32.mrf.mxu0
    %v286 = vadd.f32 %v173, %v285
    %v287 = vpop.f32.mrf.mxu0
    %288 = vdwg.mxu0
    %v289 = vmax.f32 %v275, 0.0
    %v290 = vmax.f32 %v278, 0.0
    %v291 = vmax.f32 %v283, 0.0
    %v292 = vmax.f32 %v286, 0.0
    %v293 = vsel %vm53, %v289, 0.0
    %294 = vadd.xlane.f32.xlu0 %v293
    %v295 = vpop.xlane.xlu0 %294
    %v296 = vsel %vm53, %v290, 0.0
    %297 = vadd.xlane.f32.xlu0 %v296
    %v298 = vpop.xlane.xlu0 %297
    %v299 = vsel %vm53, %v291, 0.0
    %300 = vadd.xlane.f32.xlu0 %v299
    %v301 = vpop.xlane.xlu0 %300
    %v302 = vsel %vm53, %v292, 0.0
    %303 = vadd.xlane.f32.xlu0 %v302
    %v304 = vpop.xlane.xlu0 %303
    %v305 = vrcp.pop 32.0
    %v306 = vmul.f32 %v295, %v305
    %v307 = vmul.f32 %v298, %v305
    %v308 = vmul.f32 %v301, %v305
    %v309 = vmul.f32 %v304, %v305
    %v310 = vsub.f32 %v289, %v306
    %v311 = vsub.f32 %v290, %v307
    %v312 = vsub.f32 %v291, %v308
    %v313 = vsub.f32 %v292, %v309
    %v314 = vmul.f32 %v310, %v310
    %v315 = vmul.f32 %v311, %v311
    %v316 = vmul.f32 %v312, %v312
    %v317 = vmul.f32 %v313, %v313
    %v318 = vsel %vm53, %v314, 0.0
    %319 = vadd.xlane.f32.xlu0 %v318
    %v320 = vpop.xlane.xlu0 %319
    %v321 = vsel %vm53, %v315, 0.0
    %322 = vadd.xlane.f32.xlu0 %v321
    %v323 = vpop.xlane.xlu0 %322
    %v324 = vsel %vm53, %v316, 0.0
    %325 = vadd.xlane.f32.xlu0 %v324
    %v326 = vpop.xlane.xlu0 %325
    %v327 = vsel %vm53, %v317, 0.0
    %328 = vadd.xlane.f32.xlu0 %v327
    %v329 = vpop.xlane.xlu0 %328
    %v330 = vmul.f32 %v320, %v305
    %v331 = vmul.f32 %v323, %v305
    %v332 = vmul.f32 %v326, %v305
    %v333 = vmul.f32 %v329, %v305
    %v334 = vadd.f32 %v330, 1e-12
    %v335 = vadd.f32 %v331, 1e-12
    %v336 = vadd.f32 %v332, 1e-12
    %v337 = vadd.f32 %v333, 1e-12
    %v338 = vrsqrt.pop %v334
    %v339 = vrsqrt.pop %v335
    %v340 = vrsqrt.pop %v336
    %v341 = vrsqrt.pop %v337
    %v342 = vmul.f32 %v310, %v338
    %v343 = vmul.f32 %v311, %v339
    %v344 = vmul.f32 %v312, %v340
    %v345 = vmul.f32 %v313, %v341
    %v346 = vld [vmem:[%s5] sm:$0x1]
    %v347 = vlaneseq
    %v348 = vshrl.u32 %v347, 7
    %v349 = vsub.s32 0, %v348
    %v350 = vrot.slane %v346, %v349
    %v351 = vmul.f32 %v342, %v350
    %v352 = vmul.f32 %v343, %v350
    %v353 = vmul.f32 %v344, %v350
    %v354 = vmul.f32 %v345, %v350
    %v355 = vld [vmem:[%s6] sm:$0x1]
    %v356 = vlaneseq
    %v357 = vshrl.u32 %v356, 7
    %v358 = vsub.s32 0, %v357
    %v359 = vrot.slane %v355, %v358
    %v360 = vadd.f32 %v351, %v359
    %v361 = vadd.f32 %v352, %v359
    %v362 = vadd.f32 %v353, %v359
    %v363 = vadd.f32 %v354, %v359
    %364 = vst.msk [vmem:[#allocation2 + $0x8] sm:$0xff] %vm53, %v360
    %365 = vst.msk [vmem:[#allocation2 + $0x10] sm:$0xff] %vm53, %v361
    %366 = vst.msk [vmem:[#allocation2 + $0x28] sm:$0xff] %vm53, %v362
    %367 = vst.msk [vmem:[#allocation2 + $0x30] sm:$0xff] %vm53, %v363
    %v368 = vld [vmem:[#allocation2 + $0x6] sm:$0xff]
    %v369 = vld [vmem:[#allocation2 + $0xe] sm:$0xff]
    %v370 = vld [vmem:[#allocation2 + $0x26] sm:$0xff]
    %v371 = vld [vmem:[#allocation2 + $0x2e] sm:$0xff]
    %v372 = vld [vmem:[#allocation2 + $0x7] sm:$0xff]
    %v373 = vld [vmem:[#allocation2 + $0xf] sm:$0xff]
    %v374 = vld [vmem:[#allocation2 + $0x27] sm:$0xff]
    %v375 = vld [vmem:[#allocation2 + $0x2f] sm:$0xff]
    %v376 = vld [vmem:[#allocation2 + $0x8] sm:$0xff]
    %v377 = vld [vmem:[#allocation2 + $0x10] sm:$0xff]
    %v378 = vld [vmem:[#allocation2 + $0x28] sm:$0xff]
    %v379 = vld [vmem:[#allocation2 + $0x30] sm:$0xff]
    %v380 = vld [vmem:[#allocation2 + $0x9] sm:$0xff]
    %v381 = vld [vmem:[#allocation2 + $0x11] sm:$0xff]
    %v382 = vld [vmem:[#allocation2 + $0x29] sm:$0xff]
    %v383 = vld [vmem:[#allocation2 + $0x31] sm:$0xff]
    %v384 = vld [vmem:[#allocation2 + $0xa] sm:$0xff]
    %v385 = vld [vmem:[#allocation2 + $0x12] sm:$0xff]
    %v386 = vld [vmem:[#allocation2 + $0x2a] sm:$0xff]
    %v387 = vld [vmem:[#allocation2 + $0x32] sm:$0xff]
    %392 = vrot.lane.b32.xlu0 %v372, 32
    %v393 = vpop.permute.xlu0 %392
    %394 = vrot.lane.b32.xlu0 %v373, 32
    %v395 = vpop.permute.xlu0 %394
    %396 = vrot.lane.b32.xlu0 %v374, 32
    %v397 = vpop.permute.xlu0 %396
    %398 = vrot.lane.b32.xlu0 %v375, 32
    %v399 = vpop.permute.xlu0 %398
    %408 = vrot.lane.b32.xlu0 %v376, 64
    %v409 = vpop.permute.xlu0 %408
    %410 = vrot.lane.b32.xlu0 %v377, 64
    %v411 = vpop.permute.xlu0 %410
    %412 = vrot.lane.b32.xlu0 %v378, 64
    %v413 = vpop.permute.xlu0 %412
    %414 = vrot.lane.b32.xlu0 %v379, 64
    %v415 = vpop.permute.xlu0 %414
    %424 = vrot.lane.b32.xlu0 %v380, 96
    %v425 = vpop.permute.xlu0 %424
    %426 = vrot.lane.b32.xlu0 %v381, 96
    %v427 = vpop.permute.xlu0 %426
    %428 = vrot.lane.b32.xlu0 %v382, 96
    %v429 = vpop.permute.xlu0 %428
    %430 = vrot.lane.b32.xlu0 %v383, 96
    %v431 = vpop.permute.xlu0 %430
    %v436 = vsel %vm53, %v368, %v393
    %v437 = vsel %vm53, %v369, %v395
    %v438 = vsel %vm53, %v370, %v397
    %v439 = vsel %vm53, %v371, %v399
    %v440 = vsel %vm135, %v436, %v409
    %v441 = vsel %vm135, %v437, %v411
    %v442 = vsel %vm135, %v438, %v413
    %v443 = vsel %vm135, %v439, %v415
    %v444 = vsel %vm140, %v440, %v425
    %v445 = vsel %vm140, %v441, %v427
    %v446 = vsel %vm140, %v442, %v429
    %v447 = vsel %vm140, %v443, %v431
    %v448 = vpack.c.bf16 %v445, %v444
    %v449 = vpack.c.bf16 %v385, %v384
    %v450 = vpack.c.bf16 %v447, %v446
    %v451 = vpack.c.bf16 %v387, %v386
    %s452 = scalar_lea.vmem %s3, 80
    %v453 = vld [vmem:[%s452] sm:$0xf]
    %v454 = vld [vmem:[%s452 + $0x4] sm:$0xf]
    %v455 = vld [vmem:[%s452 + $0x8] sm:$0xf]
    %v456 = vld [vmem:[%s452 + $0xc] sm:$0xf]
    %v457 = vld [vmem:[%s452 + $0x10] sm:$0xf]
    %v458 = vld [vmem:[%s452 + $0x14] sm:$0xf]
    %v459 = vld [vmem:[%s452 + $0x18] sm:$0xf]
    %v460 = vld [vmem:[%s452 + $0x1c] sm:$0xf]
    %v461 = vld [vmem:[%s452 + $0x20] sm:$0xf]
    %v462 = vld [vmem:[%s452 + $0x24] sm:$0xf]
    %v463 = vld [vmem:[%s452 + $0x28] sm:$0xf]
    %v464 = vld [vmem:[%s452 + $0x2c] sm:$0xf]
    %v465 = vld [vmem:[%s452 + $0x30] sm:$0xf]
    %v466 = vld [vmem:[%s452 + $0x34] sm:$0xf]
    %v467 = vld [vmem:[%s452 + $0x38] sm:$0xf]
    %v468 = vld [vmem:[%s452 + $0x3c] sm:$0xf]
    %v469 = vld [vmem:[%s452 + $0x40] sm:$0xf]
    %v470 = vld [vmem:[%s452 + $0x44] sm:$0xf]
    %v471 = vld [vmem:[%s452 + $0x48] sm:$0xf]
    %v472 = vld [vmem:[%s452 + $0x4c] sm:$0xf]
    %v473 = vld [vmem:[%s4 + $0x1] sm:$0x1]
    %v474 = vlaneseq
    %v475 = vshrl.u32 %v474, 7
    %v476 = vsub.s32 0, %v475
    %v477 = vrot.slane %v473, %v476
    %v498 = vunpack.c.l.b16 %v453
    %v499 = vunpack.c.l.b16 %v454
    %v500 = vunpack.c.l.b16 %v455
    %v501 = vunpack.c.l.b16 %v456
    %v502 = vunpack.c.l.b16 %v457
    %v503 = vunpack.c.l.b16 %v458
    %v504 = vunpack.c.l.b16 %v459
    %v505 = vunpack.c.l.b16 %v460
    %v506 = vunpack.c.l.b16 %v461
    %v507 = vunpack.c.l.b16 %v462
    %v508 = vunpack.c.l.b16 %v463
    %v509 = vunpack.c.l.b16 %v464
    %v510 = vunpack.c.l.b16 %v465
    %v511 = vunpack.c.l.b16 %v466
    %v512 = vunpack.c.l.b16 %v467
    %v513 = vunpack.c.l.b16 %v468
    %v514 = vunpack.c.l.b16 %v469
    %v515 = vunpack.c.l.b16 %v470
    %v516 = vunpack.c.l.b16 %v471
    %v517 = vunpack.c.l.b16 %v472
    %v518 = vpack.c.b16 %v499, %v498
    %v519 = vpack.c.b16 %v501, %v500
    %v520 = vpack.c.b16 %v503, %v502
    %v521 = vpack.c.b16 %v505, %v504
    %v522 = vpack.c.b16 %v507, %v506
    %v523 = vpack.c.b16 %v509, %v508
    %v524 = vpack.c.b16 %v511, %v510
    %v525 = vpack.c.b16 %v513, %v512
    %v526 = vpack.c.b16 %v515, %v514
    %v527 = vpack.c.b16 %v517, %v516
    %v539 = vsel %vm53, %v449, 0
    %v542 = vsel %vm53, %v451, 0
    %544 = vmatprep.subr.bf16.mxu0 0
    %545 = vmatpush1.bf16.msra.mxu0 %v525
    %546 = vmatprep.subr.bf16.mxu0 0
    %547 = vmatpush1.bf16.msra.mxu0 %v524
    %548 = vmatprep.subr.bf16.mxu0 0
    %549 = vmatpush1.bf16.msra.mxu0 %v523
    %550 = vmatprep.subr.bf16.mxu0 0
    %551 = vmatpush1.bf16.msra.mxu0 %v522
    %552 = vmatprep.subr.bf16.mxu0 0
    %553 = vmatpush1.bf16.msra.mxu0 %v521
    %554 = vmatprep.subr.bf16.mxu0 0
    %555 = vmatpush1.bf16.msra.mxu0 %v520
    %556 = vmatprep.subr.bf16.mxu0 0
    %557 = vmatpush1.bf16.msra.mxu0 %v519
    %558 = vmatprep.subr.bf16.mxu0 0
    %559 = vmatpush1.bf16.msra.mxu0 %v518
    %560 = vmatprep.subr.bf16.mxu0 0
    %561 = vmatpush2.bf16.msra.mxu0 0
    %562 = vmatprep.subr.bf16.mxu0 0
    %563 = vmatpush2.bf16.msra.mxu0 0
    %564 = vmatprep.subr.bf16.mxu0 0
    %565 = vmatpush2.bf16.msra.mxu0 0
    %566 = vmatprep.subr.bf16.mxu0 0
    %567 = vmatpush2.bf16.msra.mxu0 0
    %568 = vmatprep.subr.bf16.mxu0 0
    %569 = vmatpush2.bf16.msra.mxu0 0
    %570 = vmatprep.subr.bf16.mxu0 0
    %571 = vmatpush2.bf16.msra.mxu0 0
    %572 = vmatprep.subr.bf16.mxu0 0
    %573 = vmatpush2.bf16.msra.mxu0 %v527
    %574 = vmatprep.subr.bf16.mxu0 0
    %575 = vmatpush2.bf16.msra.mxu0 %v526
    %576 = vmatprep.mubr.bf16.mxu0 %v539
    %577 = vmatmul.mubr.bf16.gmra.mxu0 %v448
    %v578 = vpop.f32.mrf.mxu0
    %v579 = vadd.f32 %v477, %v578
    %v580 = vpop.f32.mrf.mxu0
    %v581 = vpop.f32.mrf.mxu0
    %v582 = vadd.f32 %v477, %v581
    %v583 = vpop.f32.mrf.mxu0
    %584 = vmatprep.mubr.bf16.mxu0 %v542
    %585 = vmatmul.mubr.bf16.gmra.mxu0 %v450
    %v586 = vpop.f32.mrf.mxu0
    %v587 = vadd.f32 %v477, %v586
    %v588 = vpop.f32.mrf.mxu0
    %v589 = vpop.f32.mrf.mxu0
    %v590 = vadd.f32 %v477, %v589
    %v591 = vpop.f32.mrf.mxu0
    %592 = vdwg.mxu0
    %v593 = vmax.f32 %v579, 0.0
    %v594 = vmax.f32 %v582, 0.0
    %v595 = vmax.f32 %v587, 0.0
    %v596 = vmax.f32 %v590, 0.0
    %v597 = vsel %vm53, %v593, 0.0
    %598 = vadd.xlane.f32.xlu0 %v597
    %v599 = vpop.xlane.xlu0 %598
    %v600 = vsel %vm53, %v594, 0.0
    %601 = vadd.xlane.f32.xlu0 %v600
    %v602 = vpop.xlane.xlu0 %601
    %v603 = vsel %vm53, %v595, 0.0
    %604 = vadd.xlane.f32.xlu0 %v603
    %v605 = vpop.xlane.xlu0 %604
    %v606 = vsel %vm53, %v596, 0.0
    %607 = vadd.xlane.f32.xlu0 %v606
    %v608 = vpop.xlane.xlu0 %607
    %v609 = vmul.f32 %v599, %v305
    %v610 = vmul.f32 %v602, %v305
    %v611 = vmul.f32 %v605, %v305
    %v612 = vmul.f32 %v608, %v305
    %v613 = vsub.f32 %v593, %v609
    %v614 = vsub.f32 %v594, %v610
    %v615 = vsub.f32 %v595, %v611
    %v616 = vsub.f32 %v596, %v612
    %v617 = vmul.f32 %v613, %v613
    %v618 = vmul.f32 %v614, %v614
    %v619 = vmul.f32 %v615, %v615
    %v620 = vmul.f32 %v616, %v616
    %v621 = vsel %vm53, %v617, 0.0
    %622 = vadd.xlane.f32.xlu0 %v621
    %v623 = vpop.xlane.xlu0 %622
    %v624 = vsel %vm53, %v618, 0.0
    %625 = vadd.xlane.f32.xlu0 %v624
    %v626 = vpop.xlane.xlu0 %625
    %v627 = vsel %vm53, %v619, 0.0
    %628 = vadd.xlane.f32.xlu0 %v627
    %v629 = vpop.xlane.xlu0 %628
    %v630 = vsel %vm53, %v620, 0.0
    %631 = vadd.xlane.f32.xlu0 %v630
    %v632 = vpop.xlane.xlu0 %631
    %v633 = vmul.f32 %v623, %v305
    %v634 = vmul.f32 %v626, %v305
    %v635 = vmul.f32 %v629, %v305
    %v636 = vmul.f32 %v632, %v305
    %v637 = vadd.f32 %v633, 1e-12
    %v638 = vadd.f32 %v634, 1e-12
    %v639 = vadd.f32 %v635, 1e-12
    %v640 = vadd.f32 %v636, 1e-12
    %v641 = vrsqrt.pop %v637
    %v642 = vrsqrt.pop %v638
    %v643 = vrsqrt.pop %v639
    %v644 = vrsqrt.pop %v640
    %v645 = vmul.f32 %v613, %v641
    %v646 = vmul.f32 %v614, %v642
    %v647 = vmul.f32 %v615, %v643
    %v648 = vmul.f32 %v616, %v644
    %v649 = vld [vmem:[%s5 + $0x1] sm:$0x1]
    %v650 = vlaneseq
    %v651 = vshrl.u32 %v650, 7
    %v652 = vsub.s32 0, %v651
    %v653 = vrot.slane %v649, %v652
    %v654 = vmul.f32 %v645, %v653
    %v655 = vmul.f32 %v646, %v653
    %v656 = vmul.f32 %v647, %v653
    %v657 = vmul.f32 %v648, %v653
    %v658 = vld [vmem:[%s6 + $0x1] sm:$0x1]
    %v659 = vlaneseq
    %v660 = vshrl.u32 %v659, 7
    %v661 = vsub.s32 0, %v660
    %v662 = vrot.slane %v658, %v661
    %v663 = vadd.f32 %v654, %v662
    %v664 = vadd.f32 %v655, %v662
    %v665 = vadd.f32 %v656, %v662
    %v666 = vadd.f32 %v657, %v662
    %667 = vst.msk [vmem:[#allocation2 + $0x8] sm:$0xff] %vm53, %v663
    %668 = vst.msk [vmem:[#allocation2 + $0x10] sm:$0xff] %vm53, %v664
    %669 = vst.msk [vmem:[#allocation2 + $0x28] sm:$0xff] %vm53, %v665
    %670 = vst.msk [vmem:[#allocation2 + $0x30] sm:$0xff] %vm53, %v666
    %v671 = vld [vmem:[#allocation2 + $0x6] sm:$0xff]
    %v672 = vld [vmem:[#allocation2 + $0xe] sm:$0xff]
    %v673 = vld [vmem:[#allocation2 + $0x26] sm:$0xff]
    %v674 = vld [vmem:[#allocation2 + $0x2e] sm:$0xff]
    %v675 = vld [vmem:[#allocation2 + $0x7] sm:$0xff]
    %v676 = vld [vmem:[#allocation2 + $0xf] sm:$0xff]
    %v677 = vld [vmem:[#allocation2 + $0x27] sm:$0xff]
    %v678 = vld [vmem:[#allocation2 + $0x2f] sm:$0xff]
    %v679 = vld [vmem:[#allocation2 + $0x8] sm:$0xff]
    %v680 = vld [vmem:[#allocation2 + $0x10] sm:$0xff]
    %v681 = vld [vmem:[#allocation2 + $0x28] sm:$0xff]
    %v682 = vld [vmem:[#allocation2 + $0x30] sm:$0xff]
    %v683 = vld [vmem:[#allocation2 + $0x9] sm:$0xff]
    %v684 = vld [vmem:[#allocation2 + $0x11] sm:$0xff]
    %v685 = vld [vmem:[#allocation2 + $0x29] sm:$0xff]
    %v686 = vld [vmem:[#allocation2 + $0x31] sm:$0xff]
    %v687 = vld [vmem:[#allocation2 + $0xa] sm:$0xff]
    %v688 = vld [vmem:[#allocation2 + $0x12] sm:$0xff]
    %v689 = vld [vmem:[#allocation2 + $0x2a] sm:$0xff]
    %v690 = vld [vmem:[#allocation2 + $0x32] sm:$0xff]
    %695 = vrot.lane.b32.xlu0 %v675, 32
    %v696 = vpop.permute.xlu0 %695
    %697 = vrot.lane.b32.xlu0 %v676, 32
    %v698 = vpop.permute.xlu0 %697
    %699 = vrot.lane.b32.xlu0 %v677, 32
    %v700 = vpop.permute.xlu0 %699
    %701 = vrot.lane.b32.xlu0 %v678, 32
    %v702 = vpop.permute.xlu0 %701
    %711 = vrot.lane.b32.xlu0 %v679, 64
    %v712 = vpop.permute.xlu0 %711
    %713 = vrot.lane.b32.xlu0 %v680, 64
    %v714 = vpop.permute.xlu0 %713
    %715 = vrot.lane.b32.xlu0 %v681, 64
    %v716 = vpop.permute.xlu0 %715
    %717 = vrot.lane.b32.xlu0 %v682, 64
    %v718 = vpop.permute.xlu0 %717
    %727 = vrot.lane.b32.xlu0 %v683, 96
    %v728 = vpop.permute.xlu0 %727
    %729 = vrot.lane.b32.xlu0 %v684, 96
    %v730 = vpop.permute.xlu0 %729
    %731 = vrot.lane.b32.xlu0 %v685, 96
    %v732 = vpop.permute.xlu0 %731
    %733 = vrot.lane.b32.xlu0 %v686, 96
    %v734 = vpop.permute.xlu0 %733
    %v739 = vsel %vm53, %v671, %v696
    %v740 = vsel %vm53, %v672, %v698
    %v741 = vsel %vm53, %v673, %v700
    %v742 = vsel %vm53, %v674, %v702
    %v743 = vsel %vm135, %v739, %v712
    %v744 = vsel %vm135, %v740, %v714
    %v745 = vsel %vm135, %v741, %v716
    %v746 = vsel %vm135, %v742, %v718
    %v747 = vsel %vm140, %v743, %v728
    %v748 = vsel %vm140, %v744, %v730
    %v749 = vsel %vm140, %v745, %v732
    %v750 = vsel %vm140, %v746, %v734
    %v751 = vpack.c.bf16 %v748, %v747
    %v752 = vpack.c.bf16 %v688, %v687
    %v753 = vpack.c.bf16 %v750, %v749
    %v754 = vpack.c.bf16 %v690, %v689
    %s755 = scalar_lea.vmem %s3, 160
    %v756 = vld [vmem:[%s755] sm:$0xf]
    %v757 = vld [vmem:[%s755 + $0x4] sm:$0xf]
    %v758 = vld [vmem:[%s755 + $0x8] sm:$0xf]
    %v759 = vld [vmem:[%s755 + $0xc] sm:$0xf]
    %v760 = vld [vmem:[%s755 + $0x10] sm:$0xf]
    %v761 = vld [vmem:[%s755 + $0x14] sm:$0xf]
    %v762 = vld [vmem:[%s755 + $0x18] sm:$0xf]
    %v763 = vld [vmem:[%s755 + $0x1c] sm:$0xf]
    %v764 = vld [vmem:[%s755 + $0x20] sm:$0xf]
    %v765 = vld [vmem:[%s755 + $0x24] sm:$0xf]
    %v766 = vld [vmem:[%s755 + $0x28] sm:$0xf]
    %v767 = vld [vmem:[%s755 + $0x2c] sm:$0xf]
    %v768 = vld [vmem:[%s755 + $0x30] sm:$0xf]
    %v769 = vld [vmem:[%s755 + $0x34] sm:$0xf]
    %v770 = vld [vmem:[%s755 + $0x38] sm:$0xf]
    %v771 = vld [vmem:[%s755 + $0x3c] sm:$0xf]
    %v772 = vld [vmem:[%s755 + $0x40] sm:$0xf]
    %v773 = vld [vmem:[%s755 + $0x44] sm:$0xf]
    %v774 = vld [vmem:[%s755 + $0x48] sm:$0xf]
    %v775 = vld [vmem:[%s755 + $0x4c] sm:$0xf]
    %v776 = vld [vmem:[%s4 + $0x2] sm:$0x1]
    %v777 = vlaneseq
    %v778 = vshrl.u32 %v777, 7
    %v779 = vsub.s32 0, %v778
    %v780 = vrot.slane %v776, %v779
    %v801 = vunpack.c.l.b16 %v756
    %v802 = vunpack.c.l.b16 %v757
    %v803 = vunpack.c.l.b16 %v758
    %v804 = vunpack.c.l.b16 %v759
    %v805 = vunpack.c.l.b16 %v760
    %v806 = vunpack.c.l.b16 %v761
    %v807 = vunpack.c.l.b16 %v762
    %v808 = vunpack.c.l.b16 %v763
    %v809 = vunpack.c.l.b16 %v764
    %v810 = vunpack.c.l.b16 %v765
    %v811 = vunpack.c.l.b16 %v766
    %v812 = vunpack.c.l.b16 %v767
    %v813 = vunpack.c.l.b16 %v768
    %v814 = vunpack.c.l.b16 %v769
    %v815 = vunpack.c.l.b16 %v770
    %v816 = vunpack.c.l.b16 %v771
    %v817 = vunpack.c.l.b16 %v772
    %v818 = vunpack.c.l.b16 %v773
    %v819 = vunpack.c.l.b16 %v774
    %v820 = vunpack.c.l.b16 %v775
    %v821 = vpack.c.b16 %v802, %v801
    %v822 = vpack.c.b16 %v804, %v803
    %v823 = vpack.c.b16 %v806, %v805
    %v824 = vpack.c.b16 %v808, %v807
    %v825 = vpack.c.b16 %v810, %v809
    %v826 = vpack.c.b16 %v812, %v811
    %v827 = vpack.c.b16 %v814, %v813
    %v828 = vpack.c.b16 %v816, %v815
    %v829 = vpack.c.b16 %v818, %v817
    %v830 = vpack.c.b16 %v820, %v819
    %v842 = vsel %vm53, %v752, 0
    %v845 = vsel %vm53, %v754, 0
    %847 = vmatprep.subr.bf16.mxu0 0
    %848 = vmatpush1.bf16.msra.mxu0 %v828
    %849 = vmatprep.subr.bf16.mxu0 0
    %850 = vmatpush1.bf16.msra.mxu0 %v827
    %851 = vmatprep.subr.bf16.mxu0 0
    %852 = vmatpush1.bf16.msra.mxu0 %v826
    %853 = vmatprep.subr.bf16.mxu0 0
    %854 = vmatpush1.bf16.msra.mxu0 %v825
    %855 = vmatprep.subr.bf16.mxu0 0
    %856 = vmatpush1.bf16.msra.mxu0 %v824
    %857 = vmatprep.subr.bf16.mxu0 0
    %858 = vmatpush1.bf16.msra.mxu0 %v823
    %859 = vmatprep.subr.bf16.mxu0 0
    %860 = vmatpush1.bf16.msra.mxu0 %v822
    %861 = vmatprep.subr.bf16.mxu0 0
    %862 = vmatpush1.bf16.msra.mxu0 %v821
    %863 = vmatprep.subr.bf16.mxu0 0
    %864 = vmatpush2.bf16.msra.mxu0 0
    %865 = vmatprep.subr.bf16.mxu0 0
    %866 = vmatpush2.bf16.msra.mxu0 0
    %867 = vmatprep.subr.bf16.mxu0 0
    %868 = vmatpush2.bf16.msra.mxu0 0
    %869 = vmatprep.subr.bf16.mxu0 0
    %870 = vmatpush2.bf16.msra.mxu0 0
    %871 = vmatprep.subr.bf16.mxu0 0
    %872 = vmatpush2.bf16.msra.mxu0 0
    %873 = vmatprep.subr.bf16.mxu0 0
    %874 = vmatpush2.bf16.msra.mxu0 0
    %875 = vmatprep.subr.bf16.mxu0 0
    %876 = vmatpush2.bf16.msra.mxu0 %v830
    %877 = vmatprep.subr.bf16.mxu0 0
    %878 = vmatpush2.bf16.msra.mxu0 %v829
    %879 = vmatprep.mubr.bf16.mxu0 %v842
    %880 = vmatmul.mubr.bf16.gmra.mxu0 %v751
    %v881 = vpop.f32.mrf.mxu0
    %v882 = vadd.f32 %v780, %v881
    %v883 = vpop.f32.mrf.mxu0
    %v884 = vpop.f32.mrf.mxu0
    %v885 = vadd.f32 %v780, %v884
    %v886 = vpop.f32.mrf.mxu0
    %887 = vmatprep.mubr.bf16.mxu0 %v845
    %888 = vmatmul.mubr.bf16.gmra.mxu0 %v753
    %v889 = vpop.f32.mrf.mxu0
    %v890 = vadd.f32 %v780, %v889
    %v891 = vpop.f32.mrf.mxu0
    %v892 = vpop.f32.mrf.mxu0
    %v893 = vadd.f32 %v780, %v892
    %v894 = vpop.f32.mrf.mxu0
    %895 = vdwg.mxu0
    %v896 = vmax.f32 %v882, 0.0
    %v897 = vmax.f32 %v885, 0.0
    %v898 = vmax.f32 %v890, 0.0
    %v899 = vmax.f32 %v893, 0.0
    %v900 = vsel %vm53, %v896, 0.0
    %901 = vadd.xlane.f32.xlu0 %v900
    %v902 = vpop.xlane.xlu0 %901
    %v903 = vsel %vm53, %v897, 0.0
    %904 = vadd.xlane.f32.xlu0 %v903
    %v905 = vpop.xlane.xlu0 %904
    %v906 = vsel %vm53, %v898, 0.0
    %907 = vadd.xlane.f32.xlu0 %v906
    %v908 = vpop.xlane.xlu0 %907
    %v909 = vsel %vm53, %v899, 0.0
    %910 = vadd.xlane.f32.xlu0 %v909
    %v911 = vpop.xlane.xlu0 %910
    %v912 = vmul.f32 %v902, %v305
    %v913 = vmul.f32 %v905, %v305
    %v914 = vmul.f32 %v908, %v305
    %v915 = vmul.f32 %v911, %v305
    %v916 = vsub.f32 %v896, %v912
    %v917 = vsub.f32 %v897, %v913
    %v918 = vsub.f32 %v898, %v914
    %v919 = vsub.f32 %v899, %v915
    %v920 = vmul.f32 %v916, %v916
    %v921 = vmul.f32 %v917, %v917
    %v922 = vmul.f32 %v918, %v918
    %v923 = vmul.f32 %v919, %v919
    %v924 = vsel %vm53, %v920, 0.0
    %925 = vadd.xlane.f32.xlu0 %v924
    %v926 = vpop.xlane.xlu0 %925
    %v927 = vsel %vm53, %v921, 0.0
    %928 = vadd.xlane.f32.xlu0 %v927
    %v929 = vpop.xlane.xlu0 %928
    %v930 = vsel %vm53, %v922, 0.0
    %931 = vadd.xlane.f32.xlu0 %v930
    %v932 = vpop.xlane.xlu0 %931
    %v933 = vsel %vm53, %v923, 0.0
    %934 = vadd.xlane.f32.xlu0 %v933
    %v935 = vpop.xlane.xlu0 %934
    %v936 = vmul.f32 %v926, %v305
    %v937 = vmul.f32 %v929, %v305
    %v938 = vmul.f32 %v932, %v305
    %v939 = vmul.f32 %v935, %v305
    %v940 = vadd.f32 %v936, 1e-12
    %v941 = vadd.f32 %v937, 1e-12
    %v942 = vadd.f32 %v938, 1e-12
    %v943 = vadd.f32 %v939, 1e-12
    %v944 = vrsqrt.pop %v940
    %v945 = vrsqrt.pop %v941
    %v946 = vrsqrt.pop %v942
    %v947 = vrsqrt.pop %v943
    %v948 = vmul.f32 %v916, %v944
    %v949 = vmul.f32 %v917, %v945
    %v950 = vmul.f32 %v918, %v946
    %v951 = vmul.f32 %v919, %v947
    %v952 = vld [vmem:[%s5 + $0x2] sm:$0x1]
    %v953 = vlaneseq
    %v954 = vshrl.u32 %v953, 7
    %v955 = vsub.s32 0, %v954
    %v956 = vrot.slane %v952, %v955
    %v957 = vmul.f32 %v948, %v956
    %v958 = vmul.f32 %v949, %v956
    %v959 = vmul.f32 %v950, %v956
    %v960 = vmul.f32 %v951, %v956
    %v961 = vld [vmem:[%s6 + $0x2] sm:$0x1]
    %v962 = vlaneseq
    %v963 = vshrl.u32 %v962, 7
    %v964 = vsub.s32 0, %v963
    %v965 = vrot.slane %v961, %v964
    %v966 = vadd.f32 %v957, %v965
    %v967 = vadd.f32 %v958, %v965
    %v968 = vadd.f32 %v959, %v965
    %v969 = vadd.f32 %v960, %v965
    %970 = vst.msk [vmem:[#allocation2 + $0x8] sm:$0xff] %vm53, %v966
    %971 = vst.msk [vmem:[#allocation2 + $0x10] sm:$0xff] %vm53, %v967
    %972 = vst.msk [vmem:[#allocation2 + $0x28] sm:$0xff] %vm53, %v968
    %973 = vst.msk [vmem:[#allocation2 + $0x30] sm:$0xff] %vm53, %v969
    %v974 = vld [vmem:[#allocation2 + $0x6] sm:$0xff]
    %v975 = vld [vmem:[#allocation2 + $0xe] sm:$0xff]
    %v976 = vld [vmem:[#allocation2 + $0x26] sm:$0xff]
    %v977 = vld [vmem:[#allocation2 + $0x2e] sm:$0xff]
    %v978 = vld [vmem:[#allocation2 + $0x7] sm:$0xff]
    %v979 = vld [vmem:[#allocation2 + $0xf] sm:$0xff]
    %v980 = vld [vmem:[#allocation2 + $0x27] sm:$0xff]
    %v981 = vld [vmem:[#allocation2 + $0x2f] sm:$0xff]
    %v982 = vld [vmem:[#allocation2 + $0x8] sm:$0xff]
    %v983 = vld [vmem:[#allocation2 + $0x10] sm:$0xff]
    %v984 = vld [vmem:[#allocation2 + $0x28] sm:$0xff]
    %v985 = vld [vmem:[#allocation2 + $0x30] sm:$0xff]
    %v986 = vld [vmem:[#allocation2 + $0x9] sm:$0xff]
    %v987 = vld [vmem:[#allocation2 + $0x11] sm:$0xff]
    %v988 = vld [vmem:[#allocation2 + $0x29] sm:$0xff]
    %v989 = vld [vmem:[#allocation2 + $0x31] sm:$0xff]
    %v990 = vld [vmem:[#allocation2 + $0xa] sm:$0xff]
    %v991 = vld [vmem:[#allocation2 + $0x12] sm:$0xff]
    %v992 = vld [vmem:[#allocation2 + $0x2a] sm:$0xff]
    %v993 = vld [vmem:[#allocation2 + $0x32] sm:$0xff]
    %998 = vrot.lane.b32.xlu0 %v978, 32
    %v999 = vpop.permute.xlu0 %998
    %1000 = vrot.lane.b32.xlu0 %v979, 32
    %v1001 = vpop.permute.xlu0 %1000
    %1002 = vrot.lane.b32.xlu0 %v980, 32
    %v1003 = vpop.permute.xlu0 %1002
    %1004 = vrot.lane.b32.xlu0 %v981, 32
    %v1005 = vpop.permute.xlu0 %1004
    %1014 = vrot.lane.b32.xlu0 %v982, 64
    %v1015 = vpop.permute.xlu0 %1014
    %1016 = vrot.lane.b32.xlu0 %v983, 64
    %v1017 = vpop.permute.xlu0 %1016
    %1018 = vrot.lane.b32.xlu0 %v984, 64
    %v1019 = vpop.permute.xlu0 %1018
    %1020 = vrot.lane.b32.xlu0 %v985, 64
    %v1021 = vpop.permute.xlu0 %1020
    %1030 = vrot.lane.b32.xlu0 %v986, 96
    %v1031 = vpop.permute.xlu0 %1030
    %1032 = vrot.lane.b32.xlu0 %v987, 96
    %v1033 = vpop.permute.xlu0 %1032
    %1034 = vrot.lane.b32.xlu0 %v988, 96
    %v1035 = vpop.permute.xlu0 %1034
    %1036 = vrot.lane.b32.xlu0 %v989, 96
    %v1037 = vpop.permute.xlu0 %1036
    %v1042 = vsel %vm53, %v974, %v999
    %v1043 = vsel %vm53, %v975, %v1001
    %v1044 = vsel %vm53, %v976, %v1003
    %v1045 = vsel %vm53, %v977, %v1005
    %v1046 = vsel %vm135, %v1042, %v1015
    %v1047 = vsel %vm135, %v1043, %v1017
    %v1048 = vsel %vm135, %v1044, %v1019
    %v1049 = vsel %vm135, %v1045, %v1021
    %v1050 = vsel %vm140, %v1046, %v1031
    %v1051 = vsel %vm140, %v1047, %v1033
    %v1052 = vsel %vm140, %v1048, %v1035
    %v1053 = vsel %vm140, %v1049, %v1037
    %v1054 = vpack.c.bf16 %v1051, %v1050
    %v1055 = vpack.c.bf16 %v991, %v990
    %v1056 = vpack.c.bf16 %v1053, %v1052
    %v1057 = vpack.c.bf16 %v993, %v992
    %s1058 = scalar_lea.vmem %s3, 240
    %v1059 = vld [vmem:[%s1058] sm:$0xf]
    %v1060 = vld [vmem:[%s1058 + $0x4] sm:$0xf]
    %v1061 = vld [vmem:[%s1058 + $0x8] sm:$0xf]
    %v1062 = vld [vmem:[%s1058 + $0xc] sm:$0xf]
    %v1063 = vld [vmem:[%s1058 + $0x10] sm:$0xf]
    %v1064 = vld [vmem:[%s1058 + $0x14] sm:$0xf]
    %v1065 = vld [vmem:[%s1058 + $0x18] sm:$0xf]
    %v1066 = vld [vmem:[%s1058 + $0x1c] sm:$0xf]
    %v1067 = vld [vmem:[%s1058 + $0x20] sm:$0xf]
    %v1068 = vld [vmem:[%s1058 + $0x24] sm:$0xf]
    %v1069 = vld [vmem:[%s1058 + $0x28] sm:$0xf]
    %v1070 = vld [vmem:[%s1058 + $0x2c] sm:$0xf]
    %v1071 = vld [vmem:[%s1058 + $0x30] sm:$0xf]
    %v1072 = vld [vmem:[%s1058 + $0x34] sm:$0xf]
    %v1073 = vld [vmem:[%s1058 + $0x38] sm:$0xf]
    %v1074 = vld [vmem:[%s1058 + $0x3c] sm:$0xf]
    %v1075 = vld [vmem:[%s1058 + $0x40] sm:$0xf]
    %v1076 = vld [vmem:[%s1058 + $0x44] sm:$0xf]
    %v1077 = vld [vmem:[%s1058 + $0x48] sm:$0xf]
    %v1078 = vld [vmem:[%s1058 + $0x4c] sm:$0xf]
    %v1079 = vld [vmem:[%s4 + $0x3] sm:$0x1]
    %v1080 = vlaneseq
    %v1081 = vshrl.u32 %v1080, 7
    %v1082 = vsub.s32 0, %v1081
    %v1083 = vrot.slane %v1079, %v1082
    %v1104 = vunpack.c.l.b16 %v1059
    %v1105 = vunpack.c.l.b16 %v1060
    %v1106 = vunpack.c.l.b16 %v1061
    %v1107 = vunpack.c.l.b16 %v1062
    %v1108 = vunpack.c.l.b16 %v1063
    %v1109 = vunpack.c.l.b16 %v1064
    %v1110 = vunpack.c.l.b16 %v1065
    %v1111 = vunpack.c.l.b16 %v1066
    %v1112 = vunpack.c.l.b16 %v1067
    %v1113 = vunpack.c.l.b16 %v1068
    %v1114 = vunpack.c.l.b16 %v1069
    %v1115 = vunpack.c.l.b16 %v1070
    %v1116 = vunpack.c.l.b16 %v1071
    %v1117 = vunpack.c.l.b16 %v1072
    %v1118 = vunpack.c.l.b16 %v1073
    %v1119 = vunpack.c.l.b16 %v1074
    %v1120 = vunpack.c.l.b16 %v1075
    %v1121 = vunpack.c.l.b16 %v1076
    %v1122 = vunpack.c.l.b16 %v1077
    %v1123 = vunpack.c.l.b16 %v1078
    %v1124 = vpack.c.b16 %v1105, %v1104
    %v1125 = vpack.c.b16 %v1107, %v1106
    %v1126 = vpack.c.b16 %v1109, %v1108
    %v1127 = vpack.c.b16 %v1111, %v1110
    %v1128 = vpack.c.b16 %v1113, %v1112
    %v1129 = vpack.c.b16 %v1115, %v1114
    %v1130 = vpack.c.b16 %v1117, %v1116
    %v1131 = vpack.c.b16 %v1119, %v1118
    %v1132 = vpack.c.b16 %v1121, %v1120
    %v1133 = vpack.c.b16 %v1123, %v1122
    %v1145 = vsel %vm53, %v1055, 0
    %v1148 = vsel %vm53, %v1057, 0
    %1150 = vmatprep.subr.bf16.mxu0 0
    %1151 = vmatpush1.bf16.msra.mxu0 %v1131
    %1152 = vmatprep.subr.bf16.mxu0 0
    %1153 = vmatpush1.bf16.msra.mxu0 %v1130
    %1154 = vmatprep.subr.bf16.mxu0 0
    %1155 = vmatpush1.bf16.msra.mxu0 %v1129
    %1156 = vmatprep.subr.bf16.mxu0 0
    %1157 = vmatpush1.bf16.msra.mxu0 %v1128
    %1158 = vmatprep.subr.bf16.mxu0 0
    %1159 = vmatpush1.bf16.msra.mxu0 %v1127
    %1160 = vmatprep.subr.bf16.mxu0 0
    %1161 = vmatpush1.bf16.msra.mxu0 %v1126
    %1162 = vmatprep.subr.bf16.mxu0 0
    %1163 = vmatpush1.bf16.msra.mxu0 %v1125
    %1164 = vmatprep.subr.bf16.mxu0 0
    %1165 = vmatpush1.bf16.msra.mxu0 %v1124
    %1166 = vmatprep.subr.bf16.mxu0 0
    %1167 = vmatpush2.bf16.msra.mxu0 0
    %1168 = vmatprep.subr.bf16.mxu0 0
    %1169 = vmatpush2.bf16.msra.mxu0 0
    %1170 = vmatprep.subr.bf16.mxu0 0
    %1171 = vmatpush2.bf16.msra.mxu0 0
    %1172 = vmatprep.subr.bf16.mxu0 0
    %1173 = vmatpush2.bf16.msra.mxu0 0
    %1174 = vmatprep.subr.bf16.mxu0 0
    %1175 = vmatpush2.bf16.msra.mxu0 0
    %1176 = vmatprep.subr.bf16.mxu0 0
    %1177 = vmatpush2.bf16.msra.mxu0 0
    %1178 = vmatprep.subr.bf16.mxu0 0
    %1179 = vmatpush2.bf16.msra.mxu0 %v1133
    %1180 = vmatprep.subr.bf16.mxu0 0
    %1181 = vmatpush2.bf16.msra.mxu0 %v1132
    %1182 = vmatprep.mubr.bf16.mxu0 %v1145
    %1183 = vmatmul.mubr.bf16.gmra.mxu0 %v1054
    %v1184 = vpop.f32.mrf.mxu0
    %v1185 = vadd.f32 %v1083, %v1184
    %v1186 = vpop.f32.mrf.mxu0
    %v1187 = vpop.f32.mrf.mxu0
    %v1188 = vadd.f32 %v1083, %v1187
    %v1189 = vpop.f32.mrf.mxu0
    %1190 = vmatprep.mubr.bf16.mxu0 %v1148
    %1191 = vmatmul.mubr.bf16.gmra.mxu0 %v1056
    %v1192 = vpop.f32.mrf.mxu0
    %v1193 = vadd.f32 %v1083, %v1192
    %v1194 = vpop.f32.mrf.mxu0
    %v1195 = vpop.f32.mrf.mxu0
    %v1196 = vadd.f32 %v1083, %v1195
    %v1197 = vpop.f32.mrf.mxu0
    %1198 = vdwg.mxu0
    %v1199 = vmax.f32 %v1185, 0.0
    %v1200 = vmax.f32 %v1188, 0.0
    %v1201 = vmax.f32 %v1193, 0.0
    %v1202 = vmax.f32 %v1196, 0.0
    %v1203 = vsel %vm53, %v1199, 0.0
    %1204 = vadd.xlane.f32.xlu0 %v1203
    %v1205 = vpop.xlane.xlu0 %1204
    %v1206 = vsel %vm53, %v1200, 0.0
    %1207 = vadd.xlane.f32.xlu0 %v1206
    %v1208 = vpop.xlane.xlu0 %1207
    %v1209 = vsel %vm53, %v1201, 0.0
    %1210 = vadd.xlane.f32.xlu0 %v1209
    %v1211 = vpop.xlane.xlu0 %1210
    %v1212 = vsel %vm53, %v1202, 0.0
    %1213 = vadd.xlane.f32.xlu0 %v1212
    %v1214 = vpop.xlane.xlu0 %1213
    %v1215 = vmul.f32 %v1205, %v305
    %v1216 = vmul.f32 %v1208, %v305
    %v1217 = vmul.f32 %v1211, %v305
    %v1218 = vmul.f32 %v1214, %v305
    %v1219 = vsub.f32 %v1199, %v1215
    %v1220 = vsub.f32 %v1200, %v1216
    %v1221 = vsub.f32 %v1201, %v1217
    %v1222 = vsub.f32 %v1202, %v1218
    %v1223 = vmul.f32 %v1219, %v1219
    %v1224 = vmul.f32 %v1220, %v1220
    %v1225 = vmul.f32 %v1221, %v1221
    %v1226 = vmul.f32 %v1222, %v1222
    %v1227 = vsel %vm53, %v1223, 0.0
    %1228 = vadd.xlane.f32.xlu0 %v1227
    %v1229 = vpop.xlane.xlu0 %1228
    %v1230 = vsel %vm53, %v1224, 0.0
    %1231 = vadd.xlane.f32.xlu0 %v1230
    %v1232 = vpop.xlane.xlu0 %1231
    %v1233 = vsel %vm53, %v1225, 0.0
    %1234 = vadd.xlane.f32.xlu0 %v1233
    %v1235 = vpop.xlane.xlu0 %1234
    %v1236 = vsel %vm53, %v1226, 0.0
    %1237 = vadd.xlane.f32.xlu0 %v1236
    %v1238 = vpop.xlane.xlu0 %1237
    %v1239 = vmul.f32 %v1229, %v305
    %v1240 = vmul.f32 %v1232, %v305
    %v1241 = vmul.f32 %v1235, %v305
    %v1242 = vmul.f32 %v1238, %v305
    %v1243 = vadd.f32 %v1239, 1e-12
    %v1244 = vadd.f32 %v1240, 1e-12
    %v1245 = vadd.f32 %v1241, 1e-12
    %v1246 = vadd.f32 %v1242, 1e-12
    %v1247 = vrsqrt.pop %v1243
    %v1248 = vrsqrt.pop %v1244
    %v1249 = vrsqrt.pop %v1245
    %v1250 = vrsqrt.pop %v1246
    %v1251 = vmul.f32 %v1219, %v1247
    %v1252 = vmul.f32 %v1220, %v1248
    %v1253 = vmul.f32 %v1221, %v1249
    %v1254 = vmul.f32 %v1222, %v1250
    %v1255 = vld [vmem:[%s5 + $0x3] sm:$0x1]
    %v1256 = vlaneseq
    %v1257 = vshrl.u32 %v1256, 7
    %v1258 = vsub.s32 0, %v1257
    %v1259 = vrot.slane %v1255, %v1258
    %v1260 = vmul.f32 %v1251, %v1259
    %v1261 = vmul.f32 %v1252, %v1259
    %v1262 = vmul.f32 %v1253, %v1259
    %v1263 = vmul.f32 %v1254, %v1259
    %v1264 = vld [vmem:[%s6 + $0x3] sm:$0x1]
    %v1265 = vlaneseq
    %v1266 = vshrl.u32 %v1265, 7
    %v1267 = vsub.s32 0, %v1266
    %v1268 = vrot.slane %v1264, %v1267
    %v1269 = vadd.f32 %v1260, %v1268
    %v1270 = vadd.f32 %v1261, %v1268
    %v1271 = vadd.f32 %v1262, %v1268
    %v1272 = vadd.f32 %v1263, %v1268
    %1273 = vst.msk [vmem:[#allocation2 + $0x8] sm:$0xff] %vm53, %v1269
    %1274 = vst.msk [vmem:[#allocation2 + $0x10] sm:$0xff] %vm53, %v1270
    %1275 = vst.msk [vmem:[#allocation2 + $0x28] sm:$0xff] %vm53, %v1271
    %1276 = vst.msk [vmem:[#allocation2 + $0x30] sm:$0xff] %vm53, %v1272
    %v1277 = vld [vmem:[#allocation2 + $0x6] sm:$0xff]
    %v1278 = vld [vmem:[#allocation2 + $0xe] sm:$0xff]
    %v1279 = vld [vmem:[#allocation2 + $0x26] sm:$0xff]
    %v1280 = vld [vmem:[#allocation2 + $0x2e] sm:$0xff]
    %v1281 = vld [vmem:[#allocation2 + $0x7] sm:$0xff]
    %v1282 = vld [vmem:[#allocation2 + $0xf] sm:$0xff]
    %v1283 = vld [vmem:[#allocation2 + $0x27] sm:$0xff]
    %v1284 = vld [vmem:[#allocation2 + $0x2f] sm:$0xff]
    %v1285 = vld [vmem:[#allocation2 + $0x8] sm:$0xff]
    %v1286 = vld [vmem:[#allocation2 + $0x10] sm:$0xff]
    %v1287 = vld [vmem:[#allocation2 + $0x28] sm:$0xff]
    %v1288 = vld [vmem:[#allocation2 + $0x30] sm:$0xff]
    %v1289 = vld [vmem:[#allocation2 + $0x9] sm:$0xff]
    %v1290 = vld [vmem:[#allocation2 + $0x11] sm:$0xff]
    %v1291 = vld [vmem:[#allocation2 + $0x29] sm:$0xff]
    %v1292 = vld [vmem:[#allocation2 + $0x31] sm:$0xff]
    %v1293 = vld [vmem:[#allocation2 + $0xa] sm:$0xff]
    %v1294 = vld [vmem:[#allocation2 + $0x12] sm:$0xff]
    %v1295 = vld [vmem:[#allocation2 + $0x2a] sm:$0xff]
    %v1296 = vld [vmem:[#allocation2 + $0x32] sm:$0xff]
    %1301 = vrot.lane.b32.xlu0 %v1281, 32
    %v1302 = vpop.permute.xlu0 %1301
    %1303 = vrot.lane.b32.xlu0 %v1282, 32
    %v1304 = vpop.permute.xlu0 %1303
    %1305 = vrot.lane.b32.xlu0 %v1283, 32
    %v1306 = vpop.permute.xlu0 %1305
    %1307 = vrot.lane.b32.xlu0 %v1284, 32
    %v1308 = vpop.permute.xlu0 %1307
    %1317 = vrot.lane.b32.xlu0 %v1285, 64
    %v1318 = vpop.permute.xlu0 %1317
    %1319 = vrot.lane.b32.xlu0 %v1286, 64
    %v1320 = vpop.permute.xlu0 %1319
    %1321 = vrot.lane.b32.xlu0 %v1287, 64
    %v1322 = vpop.permute.xlu0 %1321
    %1323 = vrot.lane.b32.xlu0 %v1288, 64
    %v1324 = vpop.permute.xlu0 %1323
    %1333 = vrot.lane.b32.xlu0 %v1289, 96
    %v1334 = vpop.permute.xlu0 %1333
    %1335 = vrot.lane.b32.xlu0 %v1290, 96
    %v1336 = vpop.permute.xlu0 %1335
    %1337 = vrot.lane.b32.xlu0 %v1291, 96
    %v1338 = vpop.permute.xlu0 %1337
    %1339 = vrot.lane.b32.xlu0 %v1292, 96
    %v1340 = vpop.permute.xlu0 %1339
    %v1345 = vsel %vm53, %v1277, %v1302
    %v1346 = vsel %vm53, %v1278, %v1304
    %v1347 = vsel %vm53, %v1279, %v1306
    %v1348 = vsel %vm53, %v1280, %v1308
    %v1349 = vsel %vm135, %v1345, %v1318
    %v1350 = vsel %vm135, %v1346, %v1320
    %v1351 = vsel %vm135, %v1347, %v1322
    %v1352 = vsel %vm135, %v1348, %v1324
    %v1353 = vsel %vm140, %v1349, %v1334
    %v1354 = vsel %vm140, %v1350, %v1336
    %v1355 = vsel %vm140, %v1351, %v1338
    %v1356 = vsel %vm140, %v1352, %v1340
    %v1357 = vpack.c.bf16 %v1354, %v1353
    %v1358 = vpack.c.bf16 %v1294, %v1293
    %v1359 = vpack.c.bf16 %v1356, %v1355
    %v1360 = vpack.c.bf16 %v1296, %v1295
    %s1361 = scalar_lea.vmem %s3, 320
    %v1362 = vld [vmem:[%s1361] sm:$0xf]
    %v1363 = vld [vmem:[%s1361 + $0x4] sm:$0xf]
    %v1364 = vld [vmem:[%s1361 + $0x8] sm:$0xf]
    %v1365 = vld [vmem:[%s1361 + $0xc] sm:$0xf]
    %v1366 = vld [vmem:[%s1361 + $0x10] sm:$0xf]
    %v1367 = vld [vmem:[%s1361 + $0x14] sm:$0xf]
    %v1368 = vld [vmem:[%s1361 + $0x18] sm:$0xf]
    %v1369 = vld [vmem:[%s1361 + $0x1c] sm:$0xf]
    %v1370 = vld [vmem:[%s1361 + $0x20] sm:$0xf]
    %v1371 = vld [vmem:[%s1361 + $0x24] sm:$0xf]
    %v1372 = vld [vmem:[%s1361 + $0x28] sm:$0xf]
    %v1373 = vld [vmem:[%s1361 + $0x2c] sm:$0xf]
    %v1374 = vld [vmem:[%s1361 + $0x30] sm:$0xf]
    %v1375 = vld [vmem:[%s1361 + $0x34] sm:$0xf]
    %v1376 = vld [vmem:[%s1361 + $0x38] sm:$0xf]
    %v1377 = vld [vmem:[%s1361 + $0x3c] sm:$0xf]
    %v1378 = vld [vmem:[%s1361 + $0x40] sm:$0xf]
    %v1379 = vld [vmem:[%s1361 + $0x44] sm:$0xf]
    %v1380 = vld [vmem:[%s1361 + $0x48] sm:$0xf]
    %v1381 = vld [vmem:[%s1361 + $0x4c] sm:$0xf]
    %v1382 = vld [vmem:[%s4 + $0x4] sm:$0x1]
    %v1383 = vlaneseq
    %v1384 = vshrl.u32 %v1383, 7
    %v1385 = vsub.s32 0, %v1384
    %v1386 = vrot.slane %v1382, %v1385
    %v1407 = vunpack.c.l.b16 %v1362
    %v1408 = vunpack.c.l.b16 %v1363
    %v1409 = vunpack.c.l.b16 %v1364
    %v1410 = vunpack.c.l.b16 %v1365
    %v1411 = vunpack.c.l.b16 %v1366
    %v1412 = vunpack.c.l.b16 %v1367
    %v1413 = vunpack.c.l.b16 %v1368
    %v1414 = vunpack.c.l.b16 %v1369
    %v1415 = vunpack.c.l.b16 %v1370
    %v1416 = vunpack.c.l.b16 %v1371
    %v1417 = vunpack.c.l.b16 %v1372
    %v1418 = vunpack.c.l.b16 %v1373
    %v1419 = vunpack.c.l.b16 %v1374
    %v1420 = vunpack.c.l.b16 %v1375
    %v1421 = vunpack.c.l.b16 %v1376
    %v1422 = vunpack.c.l.b16 %v1377
    %v1423 = vunpack.c.l.b16 %v1378
    %v1424 = vunpack.c.l.b16 %v1379
    %v1425 = vunpack.c.l.b16 %v1380
    %v1426 = vunpack.c.l.b16 %v1381
    %v1427 = vpack.c.b16 %v1408, %v1407
    %v1428 = vpack.c.b16 %v1410, %v1409
    %v1429 = vpack.c.b16 %v1412, %v1411
    %v1430 = vpack.c.b16 %v1414, %v1413
    %v1431 = vpack.c.b16 %v1416, %v1415
    %v1432 = vpack.c.b16 %v1418, %v1417
    %v1433 = vpack.c.b16 %v1420, %v1419
    %v1434 = vpack.c.b16 %v1422, %v1421
    %v1435 = vpack.c.b16 %v1424, %v1423
    %v1436 = vpack.c.b16 %v1426, %v1425
    %v1448 = vsel %vm53, %v1358, 0
    %v1451 = vsel %vm53, %v1360, 0
    %1453 = vmatprep.subr.bf16.mxu0 0
    %1454 = vmatpush1.bf16.msra.mxu0 %v1434
    %1455 = vmatprep.subr.bf16.mxu0 0
    %1456 = vmatpush1.bf16.msra.mxu0 %v1433
    %1457 = vmatprep.subr.bf16.mxu0 0
    %1458 = vmatpush1.bf16.msra.mxu0 %v1432
    %1459 = vmatprep.subr.bf16.mxu0 0
    %1460 = vmatpush1.bf16.msra.mxu0 %v1431
    %1461 = vmatprep.subr.bf16.mxu0 0
    %1462 = vmatpush1.bf16.msra.mxu0 %v1430
    %1463 = vmatprep.subr.bf16.mxu0 0
    %1464 = vmatpush1.bf16.msra.mxu0 %v1429
    %1465 = vmatprep.subr.bf16.mxu0 0
    %1466 = vmatpush1.bf16.msra.mxu0 %v1428
    %1467 = vmatprep.subr.bf16.mxu0 0
    %1468 = vmatpush1.bf16.msra.mxu0 %v1427
    %1469 = vmatprep.subr.bf16.mxu0 0
    %1470 = vmatpush2.bf16.msra.mxu0 0
    %1471 = vmatprep.subr.bf16.mxu0 0
    %1472 = vmatpush2.bf16.msra.mxu0 0
    %1473 = vmatprep.subr.bf16.mxu0 0
    %1474 = vmatpush2.bf16.msra.mxu0 0
    %1475 = vmatprep.subr.bf16.mxu0 0
    %1476 = vmatpush2.bf16.msra.mxu0 0
    %1477 = vmatprep.subr.bf16.mxu0 0
    %1478 = vmatpush2.bf16.msra.mxu0 0
    %1479 = vmatprep.subr.bf16.mxu0 0
    %1480 = vmatpush2.bf16.msra.mxu0 0
    %1481 = vmatprep.subr.bf16.mxu0 0
    %1482 = vmatpush2.bf16.msra.mxu0 %v1436
    %1483 = vmatprep.subr.bf16.mxu0 0
    %1484 = vmatpush2.bf16.msra.mxu0 %v1435
    %1485 = vmatprep.mubr.bf16.mxu0 %v1448
    %1486 = vmatmul.mubr.bf16.gmra.mxu0 %v1357
    %v1487 = vpop.f32.mrf.mxu0
    %v1488 = vadd.f32 %v1386, %v1487
    %v1489 = vpop.f32.mrf.mxu0
    %v1490 = vpop.f32.mrf.mxu0
    %v1491 = vadd.f32 %v1386, %v1490
    %v1492 = vpop.f32.mrf.mxu0
    %1493 = vmatprep.mubr.bf16.mxu0 %v1451
    %1494 = vmatmul.mubr.bf16.gmra.mxu0 %v1359
    %v1495 = vpop.f32.mrf.mxu0
    %v1496 = vadd.f32 %v1386, %v1495
    %v1497 = vpop.f32.mrf.mxu0
    %v1498 = vpop.f32.mrf.mxu0
    %v1499 = vadd.f32 %v1386, %v1498
    %v1500 = vpop.f32.mrf.mxu0
    %1501 = vdwg.mxu0
    %v1502 = vmax.f32 %v1488, 0.0
    %v1503 = vmax.f32 %v1491, 0.0
    %v1504 = vmax.f32 %v1496, 0.0
    %v1505 = vmax.f32 %v1499, 0.0
    %v1506 = vsel %vm53, %v1502, 0.0
    %1507 = vadd.xlane.f32.xlu0 %v1506
    %v1508 = vpop.xlane.xlu0 %1507
    %v1509 = vsel %vm53, %v1503, 0.0
    %1510 = vadd.xlane.f32.xlu0 %v1509
    %v1511 = vpop.xlane.xlu0 %1510
    %v1512 = vsel %vm53, %v1504, 0.0
    %1513 = vadd.xlane.f32.xlu0 %v1512
    %v1514 = vpop.xlane.xlu0 %1513
    %v1515 = vsel %vm53, %v1505, 0.0
    %1516 = vadd.xlane.f32.xlu0 %v1515
    %v1517 = vpop.xlane.xlu0 %1516
    %v1518 = vmul.f32 %v1508, %v305
    %v1519 = vmul.f32 %v1511, %v305
    %v1520 = vmul.f32 %v1514, %v305
    %v1521 = vmul.f32 %v1517, %v305
    %v1522 = vsub.f32 %v1502, %v1518
    %v1523 = vsub.f32 %v1503, %v1519
    %v1524 = vsub.f32 %v1504, %v1520
    %v1525 = vsub.f32 %v1505, %v1521
    %v1526 = vmul.f32 %v1522, %v1522
    %v1527 = vmul.f32 %v1523, %v1523
    %v1528 = vmul.f32 %v1524, %v1524
    %v1529 = vmul.f32 %v1525, %v1525
    %v1530 = vsel %vm53, %v1526, 0.0
    %1531 = vadd.xlane.f32.xlu0 %v1530
    %v1532 = vpop.xlane.xlu0 %1531
    %v1533 = vsel %vm53, %v1527, 0.0
    %1534 = vadd.xlane.f32.xlu0 %v1533
    %v1535 = vpop.xlane.xlu0 %1534
    %v1536 = vsel %vm53, %v1528, 0.0
    %1537 = vadd.xlane.f32.xlu0 %v1536
    %v1538 = vpop.xlane.xlu0 %1537
    %v1539 = vsel %vm53, %v1529, 0.0
    %1540 = vadd.xlane.f32.xlu0 %v1539
    %v1541 = vpop.xlane.xlu0 %1540
    %v1542 = vmul.f32 %v1532, %v305
    %v1543 = vmul.f32 %v1535, %v305
    %v1544 = vmul.f32 %v1538, %v305
    %v1545 = vmul.f32 %v1541, %v305
    %v1546 = vadd.f32 %v1542, 1e-12
    %v1547 = vadd.f32 %v1543, 1e-12
    %v1548 = vadd.f32 %v1544, 1e-12
    %v1549 = vadd.f32 %v1545, 1e-12
    %v1550 = vrsqrt.pop %v1546
    %v1551 = vrsqrt.pop %v1547
    %v1552 = vrsqrt.pop %v1548
    %v1553 = vrsqrt.pop %v1549
    %v1554 = vmul.f32 %v1522, %v1550
    %v1555 = vmul.f32 %v1523, %v1551
    %v1556 = vmul.f32 %v1524, %v1552
    %v1557 = vmul.f32 %v1525, %v1553
    %v1558 = vld [vmem:[%s5 + $0x4] sm:$0x1]
    %v1559 = vlaneseq
    %v1560 = vshrl.u32 %v1559, 7
    %v1561 = vsub.s32 0, %v1560
    %v1562 = vrot.slane %v1558, %v1561
    %v1563 = vmul.f32 %v1554, %v1562
    %v1564 = vmul.f32 %v1555, %v1562
    %v1565 = vmul.f32 %v1556, %v1562
    %v1566 = vmul.f32 %v1557, %v1562
    %v1567 = vld [vmem:[%s6 + $0x4] sm:$0x1]
    %v1568 = vlaneseq
    %v1569 = vshrl.u32 %v1568, 7
    %v1570 = vsub.s32 0, %v1569
    %v1571 = vrot.slane %v1567, %v1570
    %v1572 = vadd.f32 %v1563, %v1571
    %v1573 = vadd.f32 %v1564, %v1571
    %v1574 = vadd.f32 %v1565, %v1571
    %v1575 = vadd.f32 %v1566, %v1571
    %v1576 = vld [vmem:[%s7] sm:$0x1]
    %v1577 = vpack.c.bf16 %v1573, %v1572
    %v1578 = vpack.c.bf16 %v1575, %v1574
    %v1579 = vld [vmem:[%s8] sm:$0x3]
    %1581 = vset.pattern.permute.xlu0 0
    %1582 = vperm.xlu0 %1581, %v1579
    %v1583 = vpop.permute.xlu0 %1582
    %v1586 = vsel %vm53, %v1576, 0
    %v1589 = vsel %vm53, %v1577, 0
    %v1592 = vsel %vm53, %v1578, 0
    %1594 = vmatprep.subr.bf16.mxu0 0
    %1595 = vmatpush1.bf16.xpose.msra.mxu0 0
    %1596 = vmatprep.subr.bf16.mxu0 0
    %1597 = vmatpush1.bf16.xpose.msra.mxu0 0
    %1598 = vmatprep.subr.bf16.mxu0 0
    %1599 = vmatpush1.bf16.xpose.msra.mxu0 0
    %1600 = vmatprep.subr.bf16.mxu0 0
    %1601 = vmatpush1.bf16.xpose.msra.mxu0 0
    %1602 = vmatprep.subr.bf16.mxu0 0
    %1603 = vmatpush1.bf16.xpose.msra.mxu0 0
    %1604 = vmatprep.subr.bf16.mxu0 0
    %1605 = vmatpush1.bf16.xpose.msra.mxu0 0
    %1606 = vmatprep.subr.bf16.mxu0 0
    %1607 = vmatpush1.bf16.xpose.msra.mxu0 %v1592
    %1608 = vmatprep.subr.bf16.mxu0 0
    %1609 = vmatpush1.bf16.xpose.msra.mxu0 %v1589
    %1610 = vmatprep.subr.bf16.mxu0 0
    %1611 = vmatpush2.bf16.xpose.msra.mxu0 0
    %1612 = vmatprep.subr.bf16.mxu0 0
    %1613 = vmatpush2.bf16.xpose.msra.mxu0 0
    %1614 = vmatprep.subr.bf16.mxu0 0
    %1615 = vmatpush2.bf16.xpose.msra.mxu0 0
    %1616 = vmatprep.subr.bf16.mxu0 0
    %1617 = vmatpush2.bf16.xpose.msra.mxu0 0
    %1618 = vmatprep.subr.bf16.mxu0 0
    %1619 = vmatpush2.bf16.xpose.msra.mxu0 0
    %1620 = vmatprep.subr.bf16.mxu0 0
    %1621 = vmatpush2.bf16.xpose.msra.mxu0 0
    %1622 = vmatprep.subr.bf16.mxu0 0
    %1623 = vmatpush2.bf16.xpose.msra.mxu0 0
    %1624 = vmatprep.subr.bf16.mxu0 0
    %1625 = vmatpush2.bf16.xpose.msra.mxu0 0
    %1626 = vmatprep.mubr.bf16.mxu0 0
    %1627 = vmatmul.mubr.bf16.gmra.mxu0 %v1586
    %v1628 = vpop.f32.mrf.mxu0
    %v1629 = vadd.f32 %v1583, %v1628
    %v1630 = vpop.f32.mrf.mxu0
    %v1631 = vpop.f32.mrf.mxu0
    %v1632 = vpop.f32.mrf.mxu0
    %1633 = vdwg.mxu0
    %1634 = vst.msk [vmem:[#allocation4] sm:$0x3] %vm56, %v1629
    // Predicated region
    $region38: #{tpu_custom_call.1} parent=1 // pred_check
      _
    $region39: #{tpu_custom_call.1} parent=1 // pred_check_branch
      %1636 = sbr.rel (0) target = $region41
    $region40: #{tpu_custom_call.1} parent=1 // pred_region
      %s1638 = ssub.s32 32, 32
      %1639 = vsyncadd [#allocation5], %s1638
      %s1641 = sshll.u32 [#allocation4], 4
      %s1642 = int_to_ptr.vmem [resolvable:$true] %s1641
      %1644 = dma.vmem_to_hbm [thread:$0]  %s1642, 32, %s9, [#allocation5]
    $region41: #{tpu_custom_call.1} parent=1 // pred_fallthru
      _
    // Predicated region
    $region42: #{tpu_custom_call.1} parent=1 // pred_check
      _
    $region43: #{tpu_custom_call.1} parent=1 // pred_check_branch
      %1646 = sbr.rel (0) target = $region45
    $region44: #{tpu_custom_call.1} parent=1 // pred_region
      %1647 = dma.done [#allocation5], 32
    $region45: #{tpu_custom_call.1} parent=1 // pred_fallthru
      _
    %1648 = vsyncpa [#allocation5], 1

</llo_original>
